<compile_context>
chip_gen: v7x
topology: tpu7x:2x2x1
jax: 0.10.0
libtpu: 0.0.40
codegen_flags: <defaults>
</compile_context>

<pallas_src>
import functools
import math

import jax
import jax.numpy as jnp
from jax import lax
from jax.experimental import pallas as pl
from jax.experimental.pallas import tpu as pltpu


def _attn_kernel(x_ref, wq_ref, wk_ref, wv_ref, wout_ref, o_ref, *, num_heads: int):
    # x_ref:    (B, S, E)  whole batch (bf16)
    # wq_ref:   (H, E, D)  per-head Wq with 1/sqrt(D) folded in (bf16)
    # wk_ref:   (H, E, D)  per-head Wk (bf16)
    # wv_ref:   (H, E, D)  per-head Wv (bf16)
    # wout_ref: (H, D, E)  out_proj rearranged per head (bf16)
    x = x_ref[...]
    B, S, E = x.shape
    H = num_heads
    D = E // H
    N = B * S
    G = H * B

    # Flatten batch rows into the token axis (free leading-dim reshape) and replicate once
    # across a leading head axis so the projections are plain batched matmuls.
    x2 = x.reshape(N, E)
    x_h = jnp.broadcast_to(x2[None], (H, N, E))

    # q/k/v produced directly in (H, N, D) on the MXU; f32 accumulation; scale lives in Wq.
    q = jnp.einsum("hne,hed->hnd", x_h, wq_ref[...], preferred_element_type=jnp.float32)
    k = jnp.einsum("hne,hed->hnd", x_h, wk_ref[...], preferred_element_type=jnp.float32)
    v = jnp.einsum("hne,hed->hnd", x_h, wv_ref[...], preferred_element_type=jnp.float32)

    # Fold batch into the attention batch axis: (H, B*S, D) -> (H*B, S, D)  (leading-dim
    # regrouping only, no lane movement).  Each g = h*B + b attends within its own row,
    # which is exactly the BlockDiagonalMask([S]*B) semantics — no mask needed.
    q = q.reshape(G, S, D).astype(jnp.bfloat16)
    k = k.reshape(G, S, D).astype(jnp.bfloat16)
    v = v.reshape(G, S, D).astype(jnp.bfloat16)

    # Scores / softmax in f32 (v5e-friendly); approximate EUP reciprocal for the denominator.
    s = jnp.einsum("gqd,gkd->gqk", q, k, preferred_element_type=jnp.float32)   # (G, S, S)
    s = s - jnp.max(s, axis=-1, keepdims=True)
    p = jnp.exp(s)
    p = p * pl.reciprocal(jnp.sum(p, axis=-1, keepdims=True), approx=True)

    attn = jnp.einsum("gqk,gkd->gqd", p.astype(jnp.bfloat16), v,
                      preferred_element_type=jnp.float32)                      # (G, S, D)

    # Output projection with the head-concat fused in:
    #   y[n, e] = sum_h sum_d attn[h, n, d] * out_proj[e, h*D + d]
    attn_h = attn.reshape(H, N, D).astype(jnp.bfloat16)                        # free regroup
    y = jnp.einsum("hnd,hde->hne", attn_h, wout_ref[...],
                   preferred_element_type=jnp.float32)                         # (H, N, E)
    y = jnp.sum(y, axis=0).reshape(B, S, E)                                    # (B, S, E)

    o_ref[...] = y.astype(o_ref.dtype)


def attention_xformers_pallas(hidden_states, position_ids, qkv_proj, out_proj, num_heads,
                              compute_dtype=jnp.bfloat16):
    """Forward pass of AttentionXformers. position_ids kept for parity (RoPE is an identity)."""
    del position_ids
    B, S, E = hidden_states.shape
    H = num_heads
    D = E // H
    scale = 1.0 / math.sqrt(D)

    # Cast MXU operands once in the wrapper; pre-arrange per-head weights so the kernel does
    # zero activation slicing/stacking.
    x = hidden_states.astype(compute_dtype)

    def to_heads(w):  # (E_out, E_in) F.linear weight -> (H, E_in, D) plain matmul operand
        return jnp.transpose(w.reshape(H, D, E), (0, 2, 1))

    wq_h = (to_heads(qkv_proj[:E]) * scale).astype(compute_dtype)     # softmax scale folded in
    wk_h = to_heads(qkv_proj[E:2 * E]).astype(compute_dtype)
    wv_h = to_heads(qkv_proj[2 * E:]).astype(compute_dtype)
    # out_proj (E, E) -> (H, D, E):  wout_h[h, d, e] = out_proj[e, h*D + d]
    wout_h = jnp.transpose(out_proj.reshape(E, H, D), (1, 2, 0)).astype(compute_dtype)

    # Advisory scheduling hint for XLA around the custom call.
    flops = 2 * B * S * E * (3 * E) + 2 * (2 * B * H * S * S * D) + 2 * B * S * E * E
    bytes_accessed = (x.size + wq_h.size + wk_h.size + wv_h.size + wout_h.size) * 2 \
        + B * S * E * hidden_states.dtype.itemsize
    cost = pl.CostEstimate(flops=flops, transcendentals=B * H * S * S,
                           bytes_accessed=bytes_accessed)

    kernel = functools.partial(_attn_kernel, num_heads=H)
    return pl.pallas_call(
        kernel,
        out_shape=jax.ShapeDtypeStruct((B, S, E), hidden_states.dtype),
        grid=(1,),                                       # single step: whole batch at once
        in_specs=[
            pl.BlockSpec((B, S, E), lambda i: (0, 0, 0)),
            pl.BlockSpec((H, E, D), lambda i: (0, 0, 0)),
            pl.BlockSpec((H, E, D), lambda i: (0, 0, 0)),
            pl.BlockSpec((H, E, D), lambda i: (0, 0, 0)),
            pl.BlockSpec((H, D, E), lambda i: (0, 0, 0)),
        ],
        out_specs=pl.BlockSpec((B, S, E), lambda i: (0, 0, 0)),
        compiler_params=pltpu.CompilerParams(
            dimension_semantics=("arbitrary",),
            vmem_limit_bytes=32 * 1024 * 1024),
        cost_estimate=cost,
    )(x, wq_h, wk_h, wv_h, wout_h)


def _xavier_normal(key, fan_out, fan_in):
    std = math.sqrt(2.0 / (fan_in + fan_out))
    return std * jax.random.normal(key, (fan_out, fan_in), dtype=jnp.float32)


def _reference(hidden_states, qkv_proj, out_proj, num_heads):
    B, S, E = hidden_states.shape
    D = E // num_heads
    qkv = hidden_states @ qkv_proj.T
    q, k, v = qkv[..., :E], qkv[..., E:2 * E], qkv[..., 2 * E:]
    q = q.reshape(B, S, num_heads, D)
    k = k.reshape(B, S, num_heads, D)
    v = v.reshape(B, S, num_heads, D)
    scores = jnp.einsum("bshd,bthd->bhst", q, k) / math.sqrt(D)
    p = jax.nn.softmax(scores, axis=-1)
    o = jnp.einsum("bhst,bthd->bshd", p, v).reshape(B, S, E)
    return o @ out_proj.T


if __name__ == "__main__":
    B, S, E, H = 2, 16, 32, 4   # batch, seq, embedding_dim, num_heads (head_size = 8)

    root = jax.random.PRNGKey(0)
    kx, kq, kk, kv, ko = jax.random.split(root, 5)

    hidden_states = jax.random.normal(kx, (B, S, E), dtype=jnp.float32)
    position_ids = jnp.tile(jnp.arange(S, dtype=jnp.int32)[None, :], (B, 1))

    # build_qkv_proj: three xavier_normal (E, E) matrices stacked along dim 0 -> (3E, E)
    qkv_proj = jnp.concatenate(
        [_xavier_normal(kq, E, E), _xavier_normal(kk, E, E), _xavier_normal(kv, E, E)],
        axis=0,
    )
    out_proj = _xavier_normal(ko, E, E)

    out = attention_xformers_pallas(hidden_states, position_ids, qkv_proj, out_proj, H)
    out = jax.block_until_ready(out)

    ref = _reference(hidden_states, qkv_proj, out_proj, H)
    assert out.shape == (B, S, E)
    # bf16 MXU operands (f32 accumulation) + approximate reciprocal -> loosened tolerance vs f32 ref.
    assert jnp.allclose(out, ref, rtol=3e-2, atol=3e-2), "mismatch vs. reference"

    print("KERNEL_OK")
</pallas_src>

<mosaic_0001>
module attributes {stable_mosaic.version = 11 : i64} {
  func.func @_attn_kernel(%arg0: i32, %arg1: memref<2x16x32xbf16, #tpu.memory_space<vmem>>, %arg2: memref<4x32x8xbf16, #tpu.memory_space<vmem>>, %arg3: memref<4x32x8xbf16, #tpu.memory_space<vmem>>, %arg4: memref<4x32x8xbf16, #tpu.memory_space<vmem>>, %arg5: memref<4x8x32xbf16, #tpu.memory_space<vmem>>, %arg6: memref<2x16x32xf32, #tpu.memory_space<vmem>>) attributes {dimension_semantics = [#tpu.dimension_semantics<arbitrary>], iteration_bounds = array<i64: 1>, scalar_prefetch = 0 : i64, scratch_operands = 0 : i64, tpu.core_type = #tpu.core_type<tc>, window_params = [{pipeline_mode = #tpu.pipeline_mode<synchronous>, transform_indices = @transform_0, window_bounds = array<i64: 2, 16, 32>}, {pipeline_mode = #tpu.pipeline_mode<synchronous>, transform_indices = @transform_1, window_bounds = array<i64: 4, 32, 8>}, {pipeline_mode = #tpu.pipeline_mode<synchronous>, transform_indices = @transform_2, window_bounds = array<i64: 4, 32, 8>}, {pipeline_mode = #tpu.pipeline_mode<synchronous>, transform_indices = @transform_3, window_bounds = array<i64: 4, 32, 8>}, {pipeline_mode = #tpu.pipeline_mode<synchronous>, transform_indices = @transform_4, window_bounds = array<i64: 4, 8, 32>}, {pipeline_mode = #tpu.pipeline_mode<synchronous>, transform_indices = @transform_5, window_bounds = array<i64: 2, 16, 32>}]} {
    %c0 = arith.constant 0 : index
    %c0_0 = arith.constant 0 : index
    %c0_1 = arith.constant 0 : index
    %0 = vector.load %arg1[%c0, %c0_0, %c0_1] : memref<2x16x32xbf16, #tpu.memory_space<vmem>>, vector<2x16x32xbf16>
    %1 = vector.shape_cast %0 : vector<2x16x32xbf16> to vector<32x32xbf16>
    %2 = vector.shape_cast %1 : vector<32x32xbf16> to vector<1x32x32xbf16>
    %3 = vector.shape_cast %2 : vector<1x32x32xbf16> to vector<1x32x32xbf16>
    %4 = vector.broadcast %3 : vector<1x32x32xbf16> to vector<4x32x32xbf16>
    %c0_2 = arith.constant 0 : index
    %c0_3 = arith.constant 0 : index
    %c0_4 = arith.constant 0 : index
    %5 = vector.load %arg2[%c0_2, %c0_3, %c0_4] : memref<4x32x8xbf16, #tpu.memory_space<vmem>>, vector<4x32x8xbf16>
    "tpu.trace_start"() <{level = 10 : i32, message = "hne,hed->hnd"}> : () -> ()
    %cst = arith.constant dense<0.000000e+00> : vector<4x32x8xf32>
    %6 = tpu.matmul %4, %5, %cst {dimension_numbers = #tpu.dot_dimension_numbers<[2], [1], [1], [2], [0, 0, 0, 1, 1, 2], [0], [0]>} : vector<4x32x32xbf16>, vector<4x32x8xbf16>, vector<4x32x8xf32> -> vector<4x32x8xf32>
    "tpu.trace_stop"() : () -> ()
    %c0_5 = arith.constant 0 : index
    %c0_6 = arith.constant 0 : index
    %c0_7 = arith.constant 0 : index
    %7 = vector.load %arg3[%c0_5, %c0_6, %c0_7] : memref<4x32x8xbf16, #tpu.memory_space<vmem>>, vector<4x32x8xbf16>
    "tpu.trace_start"() <{level = 10 : i32, message = "hne,hed->hnd"}> : () -> ()
    %cst_8 = arith.constant dense<0.000000e+00> : vector<4x32x8xf32>
    %8 = tpu.matmul %4, %7, %cst_8 {dimension_numbers = #tpu.dot_dimension_numbers<[2], [1], [1], [2], [0, 0, 0, 1, 1, 2], [0], [0]>} : vector<4x32x32xbf16>, vector<4x32x8xbf16>, vector<4x32x8xf32> -> vector<4x32x8xf32>
    "tpu.trace_stop"() : () -> ()
    %c0_9 = arith.constant 0 : index
    %c0_10 = arith.constant 0 : index
    %c0_11 = arith.constant 0 : index
    %9 = vector.load %arg4[%c0_9, %c0_10, %c0_11] : memref<4x32x8xbf16, #tpu.memory_space<vmem>>, vector<4x32x8xbf16>
    "tpu.trace_start"() <{level = 10 : i32, message = "hne,hed->hnd"}> : () -> ()
    %cst_12 = arith.constant dense<0.000000e+00> : vector<4x32x8xf32>
    %10 = tpu.matmul %4, %9, %cst_12 {dimension_numbers = #tpu.dot_dimension_numbers<[2], [1], [1], [2], [0, 0, 0, 1, 1, 2], [0], [0]>} : vector<4x32x32xbf16>, vector<4x32x8xbf16>, vector<4x32x8xf32> -> vector<4x32x8xf32>
    "tpu.trace_stop"() : () -> ()
    %11 = vector.shape_cast %6 : vector<4x32x8xf32> to vector<8x16x8xf32>
    %12 = arith.truncf %11 : vector<8x16x8xf32> to vector<8x16x8xbf16>
    %13 = vector.shape_cast %8 : vector<4x32x8xf32> to vector<8x16x8xf32>
    %14 = arith.truncf %13 : vector<8x16x8xf32> to vector<8x16x8xbf16>
    %15 = vector.shape_cast %10 : vector<4x32x8xf32> to vector<8x16x8xf32>
    %16 = arith.truncf %15 : vector<8x16x8xf32> to vector<8x16x8xbf16>
    "tpu.trace_start"() <{level = 10 : i32, message = "gqd,gkd->gqk"}> : () -> ()
    %cst_13 = arith.constant dense<0.000000e+00> : vector<8x16x16xf32>
    %17 = tpu.matmul %12, %14, %cst_13 {dimension_numbers = #tpu.dot_dimension_numbers<[2], [2], [1], [1], [0, 0, 0, 1, 1, 1], [0], [0]>} : vector<8x16x8xbf16>, vector<8x16x8xbf16>, vector<8x16x16xf32> -> vector<8x16x16xf32>
    "tpu.trace_stop"() : () -> ()
    %cst_14 = arith.constant dense<0xFF800000> : vector<8x16xf32>
    %18 = vector.multi_reduction <maximumf>, %17, %cst_14 [2] : vector<8x16x16xf32> to vector<8x16xf32>
    %19 = vector.shape_cast %18 : vector<8x16xf32> to vector<8x16x1xf32>
    %20 = vector.broadcast %19 : vector<8x16x1xf32> to vector<8x16x16xf32>
    %21 = arith.subf %17, %20 : vector<8x16x16xf32>
    %22 = math.exp %21 : vector<8x16x16xf32>
    %cst_15 = arith.constant dense<0.000000e+00> : vector<8x16xf32>
    %23 = vector.multi_reduction <add>, %22, %cst_15 [2] : vector<8x16x16xf32> to vector<8x16xf32>
    %24 = vector.shape_cast %23 : vector<8x16xf32> to vector<8x16x1xf32>
    %25 = tpu.reciprocal %24 {approx = true} : vector<8x16x1xf32> -> vector<8x16x1xf32>
    %26 = vector.broadcast %25 : vector<8x16x1xf32> to vector<8x16x16xf32>
    %27 = arith.mulf %22, %26 : vector<8x16x16xf32>
    %28 = arith.truncf %27 : vector<8x16x16xf32> to vector<8x16x16xbf16>
    "tpu.trace_start"() <{level = 10 : i32, message = "gqk,gkd->gqd"}> : () -> ()
    %cst_16 = arith.constant dense<0.000000e+00> : vector<8x16x8xf32>
    %29 = tpu.matmul %28, %16, %cst_16 {dimension_numbers = #tpu.dot_dimension_numbers<[2], [1], [1], [2], [0, 0, 0, 1, 1, 2], [0], [0]>} : vector<8x16x16xbf16>, vector<8x16x8xbf16>, vector<8x16x8xf32> -> vector<8x16x8xf32>
    "tpu.trace_stop"() : () -> ()
    %30 = vector.shape_cast %29 : vector<8x16x8xf32> to vector<4x32x8xf32>
    %31 = arith.truncf %30 : vector<4x32x8xf32> to vector<4x32x8xbf16>
    %c0_17 = arith.constant 0 : index
    %c0_18 = arith.constant 0 : index
    %c0_19 = arith.constant 0 : index
    %32 = vector.load %arg5[%c0_17, %c0_18, %c0_19] : memref<4x8x32xbf16, #tpu.memory_space<vmem>>, vector<4x8x32xbf16>
    "tpu.trace_start"() <{level = 10 : i32, message = "hnd,hde->hne"}> : () -> ()
    %cst_20 = arith.constant dense<0.000000e+00> : vector<4x32x32xf32>
    %33 = tpu.matmul %31, %32, %cst_20 {dimension_numbers = #tpu.dot_dimension_numbers<[2], [1], [1], [2], [0, 0, 0, 1, 1, 2], [0], [0]>} : vector<4x32x8xbf16>, vector<4x8x32xbf16>, vector<4x32x32xf32> -> vector<4x32x32xf32>
    "tpu.trace_stop"() : () -> ()
    %cst_21 = arith.constant dense<0.000000e+00> : vector<32x32xf32>
    %34 = vector.multi_reduction <add>, %33, %cst_21 [0] : vector<4x32x32xf32> to vector<32x32xf32>
    %35 = vector.shape_cast %34 : vector<32x32xf32> to vector<2x16x32xf32>
    %c0_22 = arith.constant 0 : index
    %c0_23 = arith.constant 0 : index
    %c0_24 = arith.constant 0 : index
    %36 = vector.load %arg6[%c0_22, %c0_23, %c0_24] : memref<2x16x32xf32, #tpu.memory_space<vmem>>, vector<2x16x32xf32>
    tpu.vector_store %arg6[%c0_22, %c0_23, %c0_24], %35 {strides = array<i32>} : memref<2x16x32xf32, #tpu.memory_space<vmem>>, vector<2x16x32xf32>,
    return
  }
  func.func @transform_0(%arg0: i32) -> (i32, i32, i32) {
    %c0_i32 = arith.constant 0 : i32
    %c0_i32_0 = arith.constant 0 : i32
    %c0_i32_1 = arith.constant 0 : i32
    %c0_i32_2 = arith.constant 0 : i32
    return %c0_i32, %c0_i32_0, %c0_i32_1 : i32, i32, i32
  }
  func.func @transform_1(%arg0: i32) -> (i32, i32, i32) {
    %c0_i32 = arith.constant 0 : i32
    %c0_i32_0 = arith.constant 0 : i32
    %c0_i32_1 = arith.constant 0 : i32
    %c0_i32_2 = arith.constant 0 : i32
    return %c0_i32, %c0_i32_0, %c0_i32_1 : i32, i32, i32
  }
  func.func @transform_2(%arg0: i32) -> (i32, i32, i32) {
    %c0_i32 = arith.constant 0 : i32
    %c0_i32_0 = arith.constant 0 : i32
    %c0_i32_1 = arith.constant 0 : i32
    %c0_i32_2 = arith.constant 0 : i32
    return %c0_i32, %c0_i32_0, %c0_i32_1 : i32, i32, i32
  }
  func.func @transform_3(%arg0: i32) -> (i32, i32, i32) {
    %c0_i32 = arith.constant 0 : i32
    %c0_i32_0 = arith.constant 0 : i32
    %c0_i32_1 = arith.constant 0 : i32
    %c0_i32_2 = arith.constant 0 : i32
    return %c0_i32, %c0_i32_0, %c0_i32_1 : i32, i32, i32
  }
  func.func @transform_4(%arg0: i32) -> (i32, i32, i32) {
    %c0_i32 = arith.constant 0 : i32
    %c0_i32_0 = arith.constant 0 : i32
    %c0_i32_1 = arith.constant 0 : i32
    %c0_i32_2 = arith.constant 0 : i32
    return %c0_i32, %c0_i32_0, %c0_i32_1 : i32, i32, i32
  }
  func.func @transform_5(%arg0: i32) -> (i32, i32, i32) {
    %c0_i32 = arith.constant 0 : i32
    %c0_i32_0 = arith.constant 0 : i32
    %c0_i32_1 = arith.constant 0 : i32
    %c0_i32_2 = arith.constant 0 : i32
    return %c0_i32, %c0_i32_0, %c0_i32_1 : i32, i32, i32
  }
}

</mosaic_0001>

<llo_original>
// kernel: tpu_custom_call.1
$region0: #{tpu_custom_call.1}
  #allocation0 [shape = 'u32[]', space=smem, size = 0x4, offset = 0x4, fixed_abs, tag = 'smem constant byte address 0x4 - core index']
  #allocation1 [shape = 'u32[144,128]{1,0:T(1,128)}', space=vmem, size = 0x12000, scoped, tag = 'internal scratch']
  %s0 = inlined_call_operand.vmem [shape: bf16[2,16,32], index: 0, kind: input, shape index: {}]
  %s1 = inlined_call_operand.vmem [shape: bf16[4,32,8], index: 1, kind: input, shape index: {}]
  %s2 = inlined_call_operand.vmem [shape: bf16[4,32,8], index: 2, kind: input, shape index: {}]
  %s3 = inlined_call_operand.vmem [shape: bf16[4,32,8], index: 3, kind: input, shape index: {}]
  %s4 = inlined_call_operand.vmem [shape: bf16[4,8,32], index: 4, kind: input, shape index: {}]
  %s5 = inlined_call_operand.hbm [shape: f32[2,16,32], index: 5, kind: output, shape index: {}]
  %s6 = sld [smem:[#allocation0]]
  $region30: #{tpu_custom_call.1} parent=0
    _
  %s8 = ssub.s32 1, %s6
  %s9 = scalar_select 0, %s8, %s6
  $region1: #{tpu_custom_call.1} parent=0
    #allocation2 [shape = 'u8[16384]{0}', space=vmem, size = 0x4000, scoped, tag = 'output window, operand 0, single buffered']
    #allocation3 [shape = 's32[1]{0}', space=sflag, size = 0x4, scoped, tag = 'scoped memory for tpu_custom_call.1']
    %10 = vsyncpa [#allocation3], 0
    // Predicated region
    $region2: #{tpu_custom_call.1} parent=1 // pred_check
      _
    $region3: #{tpu_custom_call.1} parent=1 // pred_check_branch
      %12 = sbr.rel (0) target = $region5
    $region4: #{tpu_custom_call.1} parent=1 // pred_region
      _
    $region5: #{tpu_custom_call.1} parent=1 // pred_fallthru
      _
    // Predicated region
    $region6: #{tpu_custom_call.1} parent=1 // pred_check
      _
    $region7: #{tpu_custom_call.1} parent=1 // pred_check_branch
      %14 = sbr.rel (0) target = $region9
    $region8: #{tpu_custom_call.1} parent=1 // pred_region
      _
    $region9: #{tpu_custom_call.1} parent=1 // pred_fallthru
      _
    // Predicated region
    $region10: #{tpu_custom_call.1} parent=1 // pred_check
      _
    $region11: #{tpu_custom_call.1} parent=1 // pred_check_branch
      %16 = sbr.rel (0) target = $region13
    $region12: #{tpu_custom_call.1} parent=1 // pred_region
      _
    $region13: #{tpu_custom_call.1} parent=1 // pred_fallthru
      _
    // Predicated region
    $region14: #{tpu_custom_call.1} parent=1 // pred_check
      _
    $region15: #{tpu_custom_call.1} parent=1 // pred_check_branch
      %18 = sbr.rel (0) target = $region17
    $region16: #{tpu_custom_call.1} parent=1 // pred_region
      _
    $region17: #{tpu_custom_call.1} parent=1 // pred_fallthru
      _
    // Predicated region
    $region18: #{tpu_custom_call.1} parent=1 // pred_check
      _
    $region19: #{tpu_custom_call.1} parent=1 // pred_check_branch
      %20 = sbr.rel (0) target = $region21
    $region20: #{tpu_custom_call.1} parent=1 // pred_region
      _
    $region21: #{tpu_custom_call.1} parent=1 // pred_fallthru
      _
    %v22 = vld [vmem:[%s0] sm:$0xf]
    %v23 = vld [vmem:[%s0 + $0x4] sm:$0xf]
    %v24 = vld [vmem:[%s0 + $0x8] sm:$0xf]
    %v25 = vld [vmem:[%s0 + $0xc] sm:$0xf]
    %v26 = vld [vmem:[%s1] sm:$0xf]
    %v27 = vld [vmem:[%s1 + $0x4] sm:$0xf]
    %v28 = vld [vmem:[%s1 + $0x8] sm:$0xf]
    %v29 = vld [vmem:[%s1 + $0xc] sm:$0xf]
    %v30 = vld [vmem:[%s1 + $0x10] sm:$0xf]
    %v31 = vld [vmem:[%s1 + $0x14] sm:$0xf]
    %v32 = vld [vmem:[%s1 + $0x18] sm:$0xf]
    %v33 = vld [vmem:[%s1 + $0x1c] sm:$0xf]
    %v34 = vld [vmem:[%s1 + $0x20] sm:$0xf]
    %v35 = vld [vmem:[%s1 + $0x24] sm:$0xf]
    %v36 = vld [vmem:[%s1 + $0x28] sm:$0xf]
    %v37 = vld [vmem:[%s1 + $0x2c] sm:$0xf]
    %v38 = vld [vmem:[%s1 + $0x30] sm:$0xf]
    %v39 = vld [vmem:[%s1 + $0x34] sm:$0xf]
    %v40 = vld [vmem:[%s1 + $0x38] sm:$0xf]
    %v41 = vld [vmem:[%s1 + $0x3c] sm:$0xf]
    %v46 = vunpack.c.l.b16 %v22
    %v47 = vunpack.c.l.b16 %v23
    %v48 = vunpack.c.l.b16 %v24
    %v49 = vunpack.c.l.b16 %v25
    %v50 = vpack.c.b16 %v47, %v46
    %v51 = vpack.c.b16 %v49, %v48
    %v56 = vunpack.c.l.b16 %v26
    %v57 = vunpack.c.l.b16 %v27
    %v58 = vunpack.c.l.b16 %v28
    %v59 = vunpack.c.l.b16 %v29
    %v60 = vpack.c.b16 %v57, %v56
    %v61 = vpack.c.b16 %v59, %v58
    %vm64 = vcmask 261120
    %v66 = vsel %vm64, %v50, 0
    %v69 = vsel %vm64, %v51, 0
    %71 = vmatprep.subr.bf16.mxu0 0
    %72 = vmatpush1.bf16.msra.mxu0 %v60
    %73 = vmatprep.subr.bf16.mxu0 0
    %74 = vmatpush1.bf16.msra.mxu0 %v61
    %75 = vmatprep.subr.bf16.mxu0 0
    %76 = vmatpush1.bf16.msra.mxu0 0
    %77 = vmatprep.subr.bf16.mxu0 0
    %78 = vmatpush1.bf16.msra.mxu0 0
    %79 = vmatprep.subr.bf16.mxu0 0
    %80 = vmatpush1.bf16.msra.mxu0 0
    %81 = vmatprep.subr.bf16.mxu0 0
    %82 = vmatpush1.bf16.msra.mxu0 0
    %83 = vmatprep.subr.bf16.mxu0 0
    %84 = vmatpush1.bf16.msra.mxu0 0
    %85 = vmatprep.subr.bf16.mxu0 0
    %86 = vmatpush1.bf16.msra.mxu0 0
    %87 = vmatprep.subr.bf16.mxu0 0
    %88 = vmatpush1.bf16.msra.mxu0 0
    %89 = vmatprep.subr.bf16.mxu0 0
    %90 = vmatpush1.bf16.msra.mxu0 0
    %91 = vmatprep.subr.bf16.mxu0 0
    %92 = vmatpush1.bf16.msra.mxu0 0
    %93 = vmatprep.subr.bf16.mxu0 0
    %94 = vmatpush1.bf16.msra.mxu0 0
    %95 = vmatprep.subr.bf16.mxu0 0
    %96 = vmatpush1.bf16.msra.mxu0 0
    %97 = vmatprep.subr.bf16.mxu0 0
    %98 = vmatpush1.bf16.msra.mxu0 0
    %99 = vmatprep.subr.bf16.mxu0 0
    %100 = vmatpush1.bf16.msra.mxu0 0
    %101 = vmatprep.subr.bf16.mxu0 0
    %102 = vmatpush1.bf16.msra.mxu0 0
    %103 = vmatprep.mubr.bf16.mxu0 0
    %104 = vmatmul.mubr.bf16.gmra.mrb[0].mxu0 %v66
    %v105 = vpop.f32.mrb[0].mxu0
    %v106 = vadd.f32 0.0, %v105
    %v107 = vpop.f32.mrb[0].mxu0
    %v108 = vpop.f32.mrb[0].mxu0
    %v109 = vadd.f32 0.0, %v108
    %v110 = vpop.f32.mrb[0].mxu0
    %111 = vmatprep.mubr.bf16.mxu0 0
    %112 = vmatmul.mubr.bf16.gmra.mrb[0].mxu0 %v69
    %v113 = vpop.f32.mrb[0].mxu0
    %v114 = vadd.f32 0.0, %v113
    %v115 = vpop.f32.mrb[0].mxu0
    %v116 = vpop.f32.mrb[0].mxu0
    %v117 = vadd.f32 0.0, %v116
    %v118 = vpop.f32.mrb[0].mxu0
    %119 = vdwg.mxu0
    %v124 = vunpack.c.l.b16 %v30
    %v125 = vunpack.c.l.b16 %v31
    %v126 = vunpack.c.l.b16 %v32
    %v127 = vunpack.c.l.b16 %v33
    %v128 = vpack.c.b16 %v125, %v124
    %v129 = vpack.c.b16 %v127, %v126
    %132 = vmatprep.subr.bf16.mxu0 0
    %133 = vmatpush1.bf16.msra.mxu0 %v128
    %134 = vmatprep.subr.bf16.mxu0 0
    %135 = vmatpush1.bf16.msra.mxu0 %v129
    %136 = vmatprep.subr.bf16.mxu0 0
    %137 = vmatpush1.bf16.msra.mxu0 0
    %138 = vmatprep.subr.bf16.mxu0 0
    %139 = vmatpush1.bf16.msra.mxu0 0
    %140 = vmatprep.subr.bf16.mxu0 0
    %141 = vmatpush1.bf16.msra.mxu0 0
    %142 = vmatprep.subr.bf16.mxu0 0
    %143 = vmatpush1.bf16.msra.mxu0 0
    %144 = vmatprep.subr.bf16.mxu0 0
    %145 = vmatpush1.bf16.msra.mxu0 0
    %146 = vmatprep.subr.bf16.mxu0 0
    %147 = vmatpush1.bf16.msra.mxu0 0
    %148 = vmatprep.subr.bf16.mxu0 0
    %149 = vmatpush1.bf16.msra.mxu0 0
    %150 = vmatprep.subr.bf16.mxu0 0
    %151 = vmatpush1.bf16.msra.mxu0 0
    %152 = vmatprep.subr.bf16.mxu0 0
    %153 = vmatpush1.bf16.msra.mxu0 0
    %154 = vmatprep.subr.bf16.mxu0 0
    %155 = vmatpush1.bf16.msra.mxu0 0
    %156 = vmatprep.subr.bf16.mxu0 0
    %157 = vmatpush1.bf16.msra.mxu0 0
    %158 = vmatprep.subr.bf16.mxu0 0
    %159 = vmatpush1.bf16.msra.mxu0 0
    %160 = vmatprep.subr.bf16.mxu0 0
    %161 = vmatpush1.bf16.msra.mxu0 0
    %162 = vmatprep.subr.bf16.mxu0 0
    %163 = vmatpush1.bf16.msra.mxu0 0
    %164 = vmatprep.mubr.bf16.mxu0 0
    %165 = vmatmul.mubr.bf16.gmra.mrb[0].mxu0 %v66
    %v166 = vpop.f32.mrb[0].mxu0
    %v167 = vadd.f32 0.0, %v166
    %v168 = vpop.f32.mrb[0].mxu0
    %v169 = vpop.f32.mrb[0].mxu0
    %v170 = vadd.f32 0.0, %v169
    %v171 = vpop.f32.mrb[0].mxu0
    %172 = vmatprep.mubr.bf16.mxu0 0
    %173 = vmatmul.mubr.bf16.gmra.mrb[0].mxu0 %v69
    %v174 = vpop.f32.mrb[0].mxu0
    %v175 = vadd.f32 0.0, %v174
    %v176 = vpop.f32.mrb[0].mxu0
    %v177 = vpop.f32.mrb[0].mxu0
    %v178 = vadd.f32 0.0, %v177
    %v179 = vpop.f32.mrb[0].mxu0
    %180 = vdwg.mxu0
    %v185 = vunpack.c.l.b16 %v34
    %v186 = vunpack.c.l.b16 %v35
    %v187 = vunpack.c.l.b16 %v36
    %v188 = vunpack.c.l.b16 %v37
    %v189 = vpack.c.b16 %v186, %v185
    %v190 = vpack.c.b16 %v188, %v187
    %193 = vmatprep.subr.bf16.mxu0 0
    %194 = vmatpush1.bf16.msra.mxu0 %v189
    %195 = vmatprep.subr.bf16.mxu0 0
    %196 = vmatpush1.bf16.msra.mxu0 %v190
    %197 = vmatprep.subr.bf16.mxu0 0
    %198 = vmatpush1.bf16.msra.mxu0 0
    %199 = vmatprep.subr.bf16.mxu0 0
    %200 = vmatpush1.bf16.msra.mxu0 0
    %201 = vmatprep.subr.bf16.mxu0 0
    %202 = vmatpush1.bf16.msra.mxu0 0
    %203 = vmatprep.subr.bf16.mxu0 0
    %204 = vmatpush1.bf16.msra.mxu0 0
    %205 = vmatprep.subr.bf16.mxu0 0
    %206 = vmatpush1.bf16.msra.mxu0 0
    %207 = vmatprep.subr.bf16.mxu0 0
    %208 = vmatpush1.bf16.msra.mxu0 0
    %209 = vmatprep.subr.bf16.mxu0 0
    %210 = vmatpush1.bf16.msra.mxu0 0
    %211 = vmatprep.subr.bf16.mxu0 0
    %212 = vmatpush1.bf16.msra.mxu0 0
    %213 = vmatprep.subr.bf16.mxu0 0
    %214 = vmatpush1.bf16.msra.mxu0 0
    %215 = vmatprep.subr.bf16.mxu0 0
    %216 = vmatpush1.bf16.msra.mxu0 0
    %217 = vmatprep.subr.bf16.mxu0 0
    %218 = vmatpush1.bf16.msra.mxu0 0
    %219 = vmatprep.subr.bf16.mxu0 0
    %220 = vmatpush1.bf16.msra.mxu0 0
    %221 = vmatprep.subr.bf16.mxu0 0
    %222 = vmatpush1.bf16.msra.mxu0 0
    %223 = vmatprep.subr.bf16.mxu0 0
    %224 = vmatpush1.bf16.msra.mxu0 0
    %225 = vmatprep.mubr.bf16.mxu0 0
    %226 = vmatmul.mubr.bf16.gmra.mrb[0].mxu0 %v66
    %v227 = vpop.f32.mrb[0].mxu0
    %v228 = vadd.f32 0.0, %v227
    %v229 = vpop.f32.mrb[0].mxu0
    %v230 = vpop.f32.mrb[0].mxu0
    %v231 = vadd.f32 0.0, %v230
    %v232 = vpop.f32.mrb[0].mxu0
    %233 = vmatprep.mubr.bf16.mxu0 0
    %234 = vmatmul.mubr.bf16.gmra.mrb[0].mxu0 %v69
    %v235 = vpop.f32.mrb[0].mxu0
    %v236 = vadd.f32 0.0, %v235
    %v237 = vpop.f32.mrb[0].mxu0
    %v238 = vpop.f32.mrb[0].mxu0
    %v239 = vadd.f32 0.0, %v238
    %v240 = vpop.f32.mrb[0].mxu0
    %241 = vdwg.mxu0
    %v246 = vunpack.c.l.b16 %v38
    %v247 = vunpack.c.l.b16 %v39
    %v248 = vunpack.c.l.b16 %v40
    %v249 = vunpack.c.l.b16 %v41
    %v250 = vpack.c.b16 %v247, %v246
    %v251 = vpack.c.b16 %v249, %v248
    %254 = vmatprep.subr.bf16.mxu0 0
    %255 = vmatpush1.bf16.msra.mxu0 %v250
    %256 = vmatprep.subr.bf16.mxu0 0
    %257 = vmatpush1.bf16.msra.mxu0 %v251
    %258 = vmatprep.subr.bf16.mxu0 0
    %259 = vmatpush1.bf16.msra.mxu0 0
    %260 = vmatprep.subr.bf16.mxu0 0
    %261 = vmatpush1.bf16.msra.mxu0 0
    %262 = vmatprep.subr.bf16.mxu0 0
    %263 = vmatpush1.bf16.msra.mxu0 0
    %264 = vmatprep.subr.bf16.mxu0 0
    %265 = vmatpush1.bf16.msra.mxu0 0
    %266 = vmatprep.subr.bf16.mxu0 0
    %267 = vmatpush1.bf16.msra.mxu0 0
    %268 = vmatprep.subr.bf16.mxu0 0
    %269 = vmatpush1.bf16.msra.mxu0 0
    %270 = vmatprep.subr.bf16.mxu0 0
    %271 = vmatpush1.bf16.msra.mxu0 0
    %272 = vmatprep.subr.bf16.mxu0 0
    %273 = vmatpush1.bf16.msra.mxu0 0
    %274 = vmatprep.subr.bf16.mxu0 0
    %275 = vmatpush1.bf16.msra.mxu0 0
    %276 = vmatprep.subr.bf16.mxu0 0
    %277 = vmatpush1.bf16.msra.mxu0 0
    %278 = vmatprep.subr.bf16.mxu0 0
    %279 = vmatpush1.bf16.msra.mxu0 0
    %280 = vmatprep.subr.bf16.mxu0 0
    %281 = vmatpush1.bf16.msra.mxu0 0
    %282 = vmatprep.subr.bf16.mxu0 0
    %283 = vmatpush1.bf16.msra.mxu0 0
    %284 = vmatprep.subr.bf16.mxu0 0
    %285 = vmatpush1.bf16.msra.mxu0 0
    %286 = vmatprep.mubr.bf16.mxu0 0
    %287 = vmatmul.mubr.bf16.gmra.mrb[0].mxu0 %v66
    %v288 = vpop.f32.mrb[0].mxu0
    %v289 = vadd.f32 0.0, %v288
    %v290 = vpop.f32.mrb[0].mxu0
    %v291 = vpop.f32.mrb[0].mxu0
    %v292 = vadd.f32 0.0, %v291
    %v293 = vpop.f32.mrb[0].mxu0
    %294 = vmatprep.mubr.bf16.mxu0 0
    %295 = vmatmul.mubr.bf16.gmra.mrb[0].mxu0 %v69
    %v296 = vpop.f32.mrb[0].mxu0
    %v297 = vadd.f32 0.0, %v296
    %v298 = vpop.f32.mrb[0].mxu0
    %v299 = vpop.f32.mrb[0].mxu0
    %v300 = vadd.f32 0.0, %v299
    %v301 = vpop.f32.mrb[0].mxu0
    %302 = vdwg.mxu0
    %v303 = vld [vmem:[%s2] sm:$0xf]
    %v304 = vld [vmem:[%s2 + $0x4] sm:$0xf]
    %v305 = vld [vmem:[%s2 + $0x8] sm:$0xf]
    %v306 = vld [vmem:[%s2 + $0xc] sm:$0xf]
    %v307 = vld [vmem:[%s2 + $0x10] sm:$0xf]
    %v308 = vld [vmem:[%s2 + $0x14] sm:$0xf]
    %v309 = vld [vmem:[%s2 + $0x18] sm:$0xf]
    %v310 = vld [vmem:[%s2 + $0x1c] sm:$0xf]
    %v311 = vld [vmem:[%s2 + $0x20] sm:$0xf]
    %v312 = vld [vmem:[%s2 + $0x24] sm:$0xf]
    %v313 = vld [vmem:[%s2 + $0x28] sm:$0xf]
    %v314 = vld [vmem:[%s2 + $0x2c] sm:$0xf]
    %v315 = vld [vmem:[%s2 + $0x30] sm:$0xf]
    %v316 = vld [vmem:[%s2 + $0x34] sm:$0xf]
    %v317 = vld [vmem:[%s2 + $0x38] sm:$0xf]
    %v318 = vld [vmem:[%s2 + $0x3c] sm:$0xf]
    %v323 = vunpack.c.l.b16 %v303
    %v324 = vunpack.c.l.b16 %v304
    %v325 = vunpack.c.l.b16 %v305
    %v326 = vunpack.c.l.b16 %v306
    %v327 = vpack.c.b16 %v324, %v323
    %v328 = vpack.c.b16 %v326, %v325
    %331 = vmatprep.subr.bf16.mxu0 0
    %332 = vmatpush1.bf16.msra.mxu0 %v327
    %333 = vmatprep.subr.bf16.mxu0 0
    %334 = vmatpush1.bf16.msra.mxu0 %v328
    %335 = vmatprep.subr.bf16.mxu0 0
    %336 = vmatpush1.bf16.msra.mxu0 0
    %337 = vmatprep.subr.bf16.mxu0 0
    %338 = vmatpush1.bf16.msra.mxu0 0
    %339 = vmatprep.subr.bf16.mxu0 0
    %340 = vmatpush1.bf16.msra.mxu0 0
    %341 = vmatprep.subr.bf16.mxu0 0
    %342 = vmatpush1.bf16.msra.mxu0 0
    %343 = vmatprep.subr.bf16.mxu0 0
    %344 = vmatpush1.bf16.msra.mxu0 0
    %345 = vmatprep.subr.bf16.mxu0 0
    %346 = vmatpush1.bf16.msra.mxu0 0
    %347 = vmatprep.subr.bf16.mxu0 0
    %348 = vmatpush1.bf16.msra.mxu0 0
    %349 = vmatprep.subr.bf16.mxu0 0
    %350 = vmatpush1.bf16.msra.mxu0 0
    %351 = vmatprep.subr.bf16.mxu0 0
    %352 = vmatpush1.bf16.msra.mxu0 0
    %353 = vmatprep.subr.bf16.mxu0 0
    %354 = vmatpush1.bf16.msra.mxu0 0
    %355 = vmatprep.subr.bf16.mxu0 0
    %356 = vmatpush1.bf16.msra.mxu0 0
    %357 = vmatprep.subr.bf16.mxu0 0
    %358 = vmatpush1.bf16.msra.mxu0 0
    %359 = vmatprep.subr.bf16.mxu0 0
    %360 = vmatpush1.bf16.msra.mxu0 0
    %361 = vmatprep.subr.bf16.mxu0 0
    %362 = vmatpush1.bf16.msra.mxu0 0
    %363 = vmatprep.mubr.bf16.mxu0 0
    %364 = vmatmul.mubr.bf16.gmra.mrb[0].mxu0 %v66
    %v365 = vpop.f32.mrb[0].mxu0
    %v366 = vadd.f32 0.0, %v365
    %v367 = vpop.f32.mrb[0].mxu0
    %v368 = vpop.f32.mrb[0].mxu0
    %v369 = vadd.f32 0.0, %v368
    %v370 = vpop.f32.mrb[0].mxu0
    %371 = vmatprep.mubr.bf16.mxu0 0
    %372 = vmatmul.mubr.bf16.gmra.mrb[0].mxu0 %v69
    %v373 = vpop.f32.mrb[0].mxu0
    %v374 = vadd.f32 0.0, %v373
    %v375 = vpop.f32.mrb[0].mxu0
    %v376 = vpop.f32.mrb[0].mxu0
    %v377 = vadd.f32 0.0, %v376
    %v378 = vpop.f32.mrb[0].mxu0
    %379 = vdwg.mxu0
    %v384 = vunpack.c.l.b16 %v307
    %v385 = vunpack.c.l.b16 %v308
    %v386 = vunpack.c.l.b16 %v309
    %v387 = vunpack.c.l.b16 %v310
    %v388 = vpack.c.b16 %v385, %v384
    %v389 = vpack.c.b16 %v387, %v386
    %392 = vmatprep.subr.bf16.mxu0 0
    %393 = vmatpush1.bf16.msra.mxu0 %v388
    %394 = vmatprep.subr.bf16.mxu0 0
    %395 = vmatpush1.bf16.msra.mxu0 %v389
    %396 = vmatprep.subr.bf16.mxu0 0
    %397 = vmatpush1.bf16.msra.mxu0 0
    %398 = vmatprep.subr.bf16.mxu0 0
    %399 = vmatpush1.bf16.msra.mxu0 0
    %400 = vmatprep.subr.bf16.mxu0 0
    %401 = vmatpush1.bf16.msra.mxu0 0
    %402 = vmatprep.subr.bf16.mxu0 0
    %403 = vmatpush1.bf16.msra.mxu0 0
    %404 = vmatprep.subr.bf16.mxu0 0
    %405 = vmatpush1.bf16.msra.mxu0 0
    %406 = vmatprep.subr.bf16.mxu0 0
    %407 = vmatpush1.bf16.msra.mxu0 0
    %408 = vmatprep.subr.bf16.mxu0 0
    %409 = vmatpush1.bf16.msra.mxu0 0
    %410 = vmatprep.subr.bf16.mxu0 0
    %411 = vmatpush1.bf16.msra.mxu0 0
    %412 = vmatprep.subr.bf16.mxu0 0
    %413 = vmatpush1.bf16.msra.mxu0 0
    %414 = vmatprep.subr.bf16.mxu0 0
    %415 = vmatpush1.bf16.msra.mxu0 0
    %416 = vmatprep.subr.bf16.mxu0 0
    %417 = vmatpush1.bf16.msra.mxu0 0
    %418 = vmatprep.subr.bf16.mxu0 0
    %419 = vmatpush1.bf16.msra.mxu0 0
    %420 = vmatprep.subr.bf16.mxu0 0
    %421 = vmatpush1.bf16.msra.mxu0 0
    %422 = vmatprep.subr.bf16.mxu0 0
    %423 = vmatpush1.bf16.msra.mxu0 0
    %424 = vmatprep.mubr.bf16.mxu0 0
    %425 = vmatmul.mubr.bf16.gmra.mrb[0].mxu0 %v66
    %v426 = vpop.f32.mrb[0].mxu0
    %v427 = vadd.f32 0.0, %v426
    %v428 = vpop.f32.mrb[0].mxu0
    %v429 = vpop.f32.mrb[0].mxu0
    %v430 = vadd.f32 0.0, %v429
    %v431 = vpop.f32.mrb[0].mxu0
    %432 = vmatprep.mubr.bf16.mxu0 0
    %433 = vmatmul.mubr.bf16.gmra.mrb[0].mxu0 %v69
    %v434 = vpop.f32.mrb[0].mxu0
    %v435 = vadd.f32 0.0, %v434
    %v436 = vpop.f32.mrb[0].mxu0
    %v437 = vpop.f32.mrb[0].mxu0
    %v438 = vadd.f32 0.0, %v437
    %v439 = vpop.f32.mrb[0].mxu0
    %440 = vdwg.mxu0
    %v445 = vunpack.c.l.b16 %v311
    %v446 = vunpack.c.l.b16 %v312
    %v447 = vunpack.c.l.b16 %v313
    %v448 = vunpack.c.l.b16 %v314
    %v449 = vpack.c.b16 %v446, %v445
    %v450 = vpack.c.b16 %v448, %v447
    %453 = vmatprep.subr.bf16.mxu0 0
    %454 = vmatpush1.bf16.msra.mxu0 %v449
    %455 = vmatprep.subr.bf16.mxu0 0
    %456 = vmatpush1.bf16.msra.mxu0 %v450
    %457 = vmatprep.subr.bf16.mxu0 0
    %458 = vmatpush1.bf16.msra.mxu0 0
    %459 = vmatprep.subr.bf16.mxu0 0
    %460 = vmatpush1.bf16.msra.mxu0 0
    %461 = vmatprep.subr.bf16.mxu0 0
    %462 = vmatpush1.bf16.msra.mxu0 0
    %463 = vmatprep.subr.bf16.mxu0 0
    %464 = vmatpush1.bf16.msra.mxu0 0
    %465 = vmatprep.subr.bf16.mxu0 0
    %466 = vmatpush1.bf16.msra.mxu0 0
    %467 = vmatprep.subr.bf16.mxu0 0
    %468 = vmatpush1.bf16.msra.mxu0 0
    %469 = vmatprep.subr.bf16.mxu0 0
    %470 = vmatpush1.bf16.msra.mxu0 0
    %471 = vmatprep.subr.bf16.mxu0 0
    %472 = vmatpush1.bf16.msra.mxu0 0
    %473 = vmatprep.subr.bf16.mxu0 0
    %474 = vmatpush1.bf16.msra.mxu0 0
    %475 = vmatprep.subr.bf16.mxu0 0
    %476 = vmatpush1.bf16.msra.mxu0 0
    %477 = vmatprep.subr.bf16.mxu0 0
    %478 = vmatpush1.bf16.msra.mxu0 0
    %479 = vmatprep.subr.bf16.mxu0 0
    %480 = vmatpush1.bf16.msra.mxu0 0
    %481 = vmatprep.subr.bf16.mxu0 0
    %482 = vmatpush1.bf16.msra.mxu0 0
    %483 = vmatprep.subr.bf16.mxu0 0
    %484 = vmatpush1.bf16.msra.mxu0 0
    %485 = vmatprep.mubr.bf16.mxu0 0
    %486 = vmatmul.mubr.bf16.gmra.mrb[0].mxu0 %v66
    %v487 = vpop.f32.mrb[0].mxu0
    %v488 = vadd.f32 0.0, %v487
    %v489 = vpop.f32.mrb[0].mxu0
    %v490 = vpop.f32.mrb[0].mxu0
    %v491 = vadd.f32 0.0, %v490
    %v492 = vpop.f32.mrb[0].mxu0
    %493 = vmatprep.mubr.bf16.mxu0 0
    %494 = vmatmul.mubr.bf16.gmra.mrb[0].mxu0 %v69
    %v495 = vpop.f32.mrb[0].mxu0
    %v496 = vadd.f32 0.0, %v495
    %v497 = vpop.f32.mrb[0].mxu0
    %v498 = vpop.f32.mrb[0].mxu0
    %v499 = vadd.f32 0.0, %v498
    %v500 = vpop.f32.mrb[0].mxu0
    %501 = vdwg.mxu0
    %v506 = vunpack.c.l.b16 %v315
    %v507 = vunpack.c.l.b16 %v316
    %v508 = vunpack.c.l.b16 %v317
    %v509 = vunpack.c.l.b16 %v318
    %v510 = vpack.c.b16 %v507, %v506
    %v511 = vpack.c.b16 %v509, %v508
    %514 = vmatprep.subr.bf16.mxu0 0
    %515 = vmatpush1.bf16.msra.mxu0 %v510
    %516 = vmatprep.subr.bf16.mxu0 0
    %517 = vmatpush1.bf16.msra.mxu0 %v511
    %518 = vmatprep.subr.bf16.mxu0 0
    %519 = vmatpush1.bf16.msra.mxu0 0
    %520 = vmatprep.subr.bf16.mxu0 0
    %521 = vmatpush1.bf16.msra.mxu0 0
    %522 = vmatprep.subr.bf16.mxu0 0
    %523 = vmatpush1.bf16.msra.mxu0 0
    %524 = vmatprep.subr.bf16.mxu0 0
    %525 = vmatpush1.bf16.msra.mxu0 0
    %526 = vmatprep.subr.bf16.mxu0 0
    %527 = vmatpush1.bf16.msra.mxu0 0
    %528 = vmatprep.subr.bf16.mxu0 0
    %529 = vmatpush1.bf16.msra.mxu0 0
    %530 = vmatprep.subr.bf16.mxu0 0
    %531 = vmatpush1.bf16.msra.mxu0 0
    %532 = vmatprep.subr.bf16.mxu0 0
    %533 = vmatpush1.bf16.msra.mxu0 0
    %534 = vmatprep.subr.bf16.mxu0 0
    %535 = vmatpush1.bf16.msra.mxu0 0
    %536 = vmatprep.subr.bf16.mxu0 0
    %537 = vmatpush1.bf16.msra.mxu0 0
    %538 = vmatprep.subr.bf16.mxu0 0
    %539 = vmatpush1.bf16.msra.mxu0 0
    %540 = vmatprep.subr.bf16.mxu0 0
    %541 = vmatpush1.bf16.msra.mxu0 0
    %542 = vmatprep.subr.bf16.mxu0 0
    %543 = vmatpush1.bf16.msra.mxu0 0
    %544 = vmatprep.subr.bf16.mxu0 0
    %545 = vmatpush1.bf16.msra.mxu0 0
    %546 = vmatprep.mubr.bf16.mxu0 0
    %547 = vmatmul.mubr.bf16.gmra.mrb[0].mxu0 %v66
    %v548 = vpop.f32.mrb[0].mxu0
    %v549 = vadd.f32 0.0, %v548
    %v550 = vpop.f32.mrb[0].mxu0
    %v551 = vpop.f32.mrb[0].mxu0
    %v552 = vadd.f32 0.0, %v551
    %v553 = vpop.f32.mrb[0].mxu0
    %554 = vmatprep.mubr.bf16.mxu0 0
    %555 = vmatmul.mubr.bf16.gmra.mrb[0].mxu0 %v69
    %v556 = vpop.f32.mrb[0].mxu0
    %v557 = vadd.f32 0.0, %v556
    %v558 = vpop.f32.mrb[0].mxu0
    %v559 = vpop.f32.mrb[0].mxu0
    %v560 = vadd.f32 0.0, %v559
    %v561 = vpop.f32.mrb[0].mxu0
    %562 = vdwg.mxu0
    %v563 = vld [vmem:[%s3] sm:$0xf]
    %v564 = vld [vmem:[%s3 + $0x4] sm:$0xf]
    %v565 = vld [vmem:[%s3 + $0x8] sm:$0xf]
    %v566 = vld [vmem:[%s3 + $0xc] sm:$0xf]
    %v567 = vld [vmem:[%s3 + $0x10] sm:$0xf]
    %v568 = vld [vmem:[%s3 + $0x14] sm:$0xf]
    %v569 = vld [vmem:[%s3 + $0x18] sm:$0xf]
    %v570 = vld [vmem:[%s3 + $0x1c] sm:$0xf]
    %v571 = vld [vmem:[%s3 + $0x20] sm:$0xf]
    %v572 = vld [vmem:[%s3 + $0x24] sm:$0xf]
    %v573 = vld [vmem:[%s3 + $0x28] sm:$0xf]
    %v574 = vld [vmem:[%s3 + $0x2c] sm:$0xf]
    %v575 = vld [vmem:[%s3 + $0x30] sm:$0xf]
    %v576 = vld [vmem:[%s3 + $0x34] sm:$0xf]
    %v577 = vld [vmem:[%s3 + $0x38] sm:$0xf]
    %v578 = vld [vmem:[%s3 + $0x3c] sm:$0xf]
    %v583 = vunpack.c.l.b16 %v563
    %v584 = vunpack.c.l.b16 %v564
    %v585 = vunpack.c.l.b16 %v565
    %v586 = vunpack.c.l.b16 %v566
    %v587 = vpack.c.b16 %v584, %v583
    %v588 = vpack.c.b16 %v586, %v585
    %591 = vmatprep.subr.bf16.mxu0 0
    %592 = vmatpush1.bf16.msra.mxu0 %v587
    %593 = vmatprep.subr.bf16.mxu0 0
    %594 = vmatpush1.bf16.msra.mxu0 %v588
    %595 = vmatprep.subr.bf16.mxu0 0
    %596 = vmatpush1.bf16.msra.mxu0 0
    %597 = vmatprep.subr.bf16.mxu0 0
    %598 = vmatpush1.bf16.msra.mxu0 0
    %599 = vmatprep.subr.bf16.mxu0 0
    %600 = vmatpush1.bf16.msra.mxu0 0
    %601 = vmatprep.subr.bf16.mxu0 0
    %602 = vmatpush1.bf16.msra.mxu0 0
    %603 = vmatprep.subr.bf16.mxu0 0
    %604 = vmatpush1.bf16.msra.mxu0 0
    %605 = vmatprep.subr.bf16.mxu0 0
    %606 = vmatpush1.bf16.msra.mxu0 0
    %607 = vmatprep.subr.bf16.mxu0 0
    %608 = vmatpush1.bf16.msra.mxu0 0
    %609 = vmatprep.subr.bf16.mxu0 0
    %610 = vmatpush1.bf16.msra.mxu0 0
    %611 = vmatprep.subr.bf16.mxu0 0
    %612 = vmatpush1.bf16.msra.mxu0 0
    %613 = vmatprep.subr.bf16.mxu0 0
    %614 = vmatpush1.bf16.msra.mxu0 0
    %615 = vmatprep.subr.bf16.mxu0 0
    %616 = vmatpush1.bf16.msra.mxu0 0
    %617 = vmatprep.subr.bf16.mxu0 0
    %618 = vmatpush1.bf16.msra.mxu0 0
    %619 = vmatprep.subr.bf16.mxu0 0
    %620 = vmatpush1.bf16.msra.mxu0 0
    %621 = vmatprep.subr.bf16.mxu0 0
    %622 = vmatpush1.bf16.msra.mxu0 0
    %623 = vmatprep.mubr.bf16.mxu0 0
    %624 = vmatmul.mubr.bf16.gmra.mrb[0].mxu0 %v66
    %v625 = vpop.f32.mrb[0].mxu0
    %v626 = vadd.f32 0.0, %v625
    %v627 = vpop.f32.mrb[0].mxu0
    %v628 = vpop.f32.mrb[0].mxu0
    %v629 = vadd.f32 0.0, %v628
    %v630 = vpop.f32.mrb[0].mxu0
    %631 = vmatprep.mubr.bf16.mxu0 0
    %632 = vmatmul.mubr.bf16.gmra.mrb[0].mxu0 %v69
    %v633 = vpop.f32.mrb[0].mxu0
    %v634 = vadd.f32 0.0, %v633
    %v635 = vpop.f32.mrb[0].mxu0
    %v636 = vpop.f32.mrb[0].mxu0
    %v637 = vadd.f32 0.0, %v636
    %v638 = vpop.f32.mrb[0].mxu0
    %639 = vdwg.mxu0
    %v644 = vunpack.c.l.b16 %v567
    %v645 = vunpack.c.l.b16 %v568
    %v646 = vunpack.c.l.b16 %v569
    %v647 = vunpack.c.l.b16 %v570
    %v648 = vpack.c.b16 %v645, %v644
    %v649 = vpack.c.b16 %v647, %v646
    %652 = vmatprep.subr.bf16.mxu0 0
    %653 = vmatpush1.bf16.msra.mxu0 %v648
    %654 = vmatprep.subr.bf16.mxu0 0
    %655 = vmatpush1.bf16.msra.mxu0 %v649
    %656 = vmatprep.subr.bf16.mxu0 0
    %657 = vmatpush1.bf16.msra.mxu0 0
    %658 = vmatprep.subr.bf16.mxu0 0
    %659 = vmatpush1.bf16.msra.mxu0 0
    %660 = vmatprep.subr.bf16.mxu0 0
    %661 = vmatpush1.bf16.msra.mxu0 0
    %662 = vmatprep.subr.bf16.mxu0 0
    %663 = vmatpush1.bf16.msra.mxu0 0
    %664 = vmatprep.subr.bf16.mxu0 0
    %665 = vmatpush1.bf16.msra.mxu0 0
    %666 = vmatprep.subr.bf16.mxu0 0
    %667 = vmatpush1.bf16.msra.mxu0 0
    %668 = vmatprep.subr.bf16.mxu0 0
    %669 = vmatpush1.bf16.msra.mxu0 0
    %670 = vmatprep.subr.bf16.mxu0 0
    %671 = vmatpush1.bf16.msra.mxu0 0
    %672 = vmatprep.subr.bf16.mxu0 0
    %673 = vmatpush1.bf16.msra.mxu0 0
    %674 = vmatprep.subr.bf16.mxu0 0
    %675 = vmatpush1.bf16.msra.mxu0 0
    %676 = vmatprep.subr.bf16.mxu0 0
    %677 = vmatpush1.bf16.msra.mxu0 0
    %678 = vmatprep.subr.bf16.mxu0 0
    %679 = vmatpush1.bf16.msra.mxu0 0
    %680 = vmatprep.subr.bf16.mxu0 0
    %681 = vmatpush1.bf16.msra.mxu0 0
    %682 = vmatprep.subr.bf16.mxu0 0
    %683 = vmatpush1.bf16.msra.mxu0 0
    %684 = vmatprep.mubr.bf16.mxu0 0
    %685 = vmatmul.mubr.bf16.gmra.mrb[0].mxu0 %v66
    %v686 = vpop.f32.mrb[0].mxu0
    %v687 = vadd.f32 0.0, %v686
    %v688 = vpop.f32.mrb[0].mxu0
    %v689 = vpop.f32.mrb[0].mxu0
    %v690 = vadd.f32 0.0, %v689
    %v691 = vpop.f32.mrb[0].mxu0
    %692 = vmatprep.mubr.bf16.mxu0 0
    %693 = vmatmul.mubr.bf16.gmra.mrb[0].mxu0 %v69
    %v694 = vpop.f32.mrb[0].mxu0
    %v695 = vadd.f32 0.0, %v694
    %v696 = vpop.f32.mrb[0].mxu0
    %v697 = vpop.f32.mrb[0].mxu0
    %v698 = vadd.f32 0.0, %v697
    %v699 = vpop.f32.mrb[0].mxu0
    %700 = vdwg.mxu0
    %v705 = vunpack.c.l.b16 %v571
    %v706 = vunpack.c.l.b16 %v572
    %v707 = vunpack.c.l.b16 %v573
    %v708 = vunpack.c.l.b16 %v574
    %v709 = vpack.c.b16 %v706, %v705
    %v710 = vpack.c.b16 %v708, %v707
    %713 = vmatprep.subr.bf16.mxu0 0
    %714 = vmatpush1.bf16.msra.mxu0 %v709
    %715 = vmatprep.subr.bf16.mxu0 0
    %716 = vmatpush1.bf16.msra.mxu0 %v710
    %717 = vmatprep.subr.bf16.mxu0 0
    %718 = vmatpush1.bf16.msra.mxu0 0
    %719 = vmatprep.subr.bf16.mxu0 0
    %720 = vmatpush1.bf16.msra.mxu0 0
    %721 = vmatprep.subr.bf16.mxu0 0
    %722 = vmatpush1.bf16.msra.mxu0 0
    %723 = vmatprep.subr.bf16.mxu0 0
    %724 = vmatpush1.bf16.msra.mxu0 0
    %725 = vmatprep.subr.bf16.mxu0 0
    %726 = vmatpush1.bf16.msra.mxu0 0
    %727 = vmatprep.subr.bf16.mxu0 0
    %728 = vmatpush1.bf16.msra.mxu0 0
    %729 = vmatprep.subr.bf16.mxu0 0
    %730 = vmatpush1.bf16.msra.mxu0 0
    %731 = vmatprep.subr.bf16.mxu0 0
    %732 = vmatpush1.bf16.msra.mxu0 0
    %733 = vmatprep.subr.bf16.mxu0 0
    %734 = vmatpush1.bf16.msra.mxu0 0
    %735 = vmatprep.subr.bf16.mxu0 0
    %736 = vmatpush1.bf16.msra.mxu0 0
    %737 = vmatprep.subr.bf16.mxu0 0
    %738 = vmatpush1.bf16.msra.mxu0 0
    %739 = vmatprep.subr.bf16.mxu0 0
    %740 = vmatpush1.bf16.msra.mxu0 0
    %741 = vmatprep.subr.bf16.mxu0 0
    %742 = vmatpush1.bf16.msra.mxu0 0
    %743 = vmatprep.subr.bf16.mxu0 0
    %744 = vmatpush1.bf16.msra.mxu0 0
    %745 = vmatprep.mubr.bf16.mxu0 0
    %746 = vmatmul.mubr.bf16.gmra.mrb[0].mxu0 %v66
    %v747 = vpop.f32.mrb[0].mxu0
    %v748 = vadd.f32 0.0, %v747
    %v749 = vpop.f32.mrb[0].mxu0
    %v750 = vpop.f32.mrb[0].mxu0
    %v751 = vadd.f32 0.0, %v750
    %v752 = vpop.f32.mrb[0].mxu0
    %753 = vmatprep.mubr.bf16.mxu0 0
    %754 = vmatmul.mubr.bf16.gmra.mrb[0].mxu0 %v69
    %v755 = vpop.f32.mrb[0].mxu0
    %v756 = vadd.f32 0.0, %v755
    %v757 = vpop.f32.mrb[0].mxu0
    %v758 = vpop.f32.mrb[0].mxu0
    %v759 = vadd.f32 0.0, %v758
    %v760 = vpop.f32.mrb[0].mxu0
    %761 = vdwg.mxu0
    %v766 = vunpack.c.l.b16 %v575
    %v767 = vunpack.c.l.b16 %v576
    %v768 = vunpack.c.l.b16 %v577
    %v769 = vunpack.c.l.b16 %v578
    %v770 = vpack.c.b16 %v767, %v766
    %v771 = vpack.c.b16 %v769, %v768
    %774 = vmatprep.subr.bf16.mxu0 0
    %775 = vmatpush1.bf16.msra.mxu0 %v770
    %776 = vmatprep.subr.bf16.mxu0 0
    %777 = vmatpush1.bf16.msra.mxu0 %v771
    %778 = vmatprep.subr.bf16.mxu0 0
    %779 = vmatpush1.bf16.msra.mxu0 0
    %780 = vmatprep.subr.bf16.mxu0 0
    %781 = vmatpush1.bf16.msra.mxu0 0
    %782 = vmatprep.subr.bf16.mxu0 0
    %783 = vmatpush1.bf16.msra.mxu0 0
    %784 = vmatprep.subr.bf16.mxu0 0
    %785 = vmatpush1.bf16.msra.mxu0 0
    %786 = vmatprep.subr.bf16.mxu0 0
    %787 = vmatpush1.bf16.msra.mxu0 0
    %788 = vmatprep.subr.bf16.mxu0 0
    %789 = vmatpush1.bf16.msra.mxu0 0
    %790 = vmatprep.subr.bf16.mxu0 0
    %791 = vmatpush1.bf16.msra.mxu0 0
    %792 = vmatprep.subr.bf16.mxu0 0
    %793 = vmatpush1.bf16.msra.mxu0 0
    %794 = vmatprep.subr.bf16.mxu0 0
    %795 = vmatpush1.bf16.msra.mxu0 0
    %796 = vmatprep.subr.bf16.mxu0 0
    %797 = vmatpush1.bf16.msra.mxu0 0
    %798 = vmatprep.subr.bf16.mxu0 0
    %799 = vmatpush1.bf16.msra.mxu0 0
    %800 = vmatprep.subr.bf16.mxu0 0
    %801 = vmatpush1.bf16.msra.mxu0 0
    %802 = vmatprep.subr.bf16.mxu0 0
    %803 = vmatpush1.bf16.msra.mxu0 0
    %804 = vmatprep.subr.bf16.mxu0 0
    %805 = vmatpush1.bf16.msra.mxu0 0
    %806 = vmatprep.mubr.bf16.mxu0 0
    %807 = vmatmul.mubr.bf16.gmra.mrb[0].mxu0 %v66
    %v808 = vpop.f32.mrb[0].mxu0
    %v809 = vadd.f32 0.0, %v808
    %v810 = vpop.f32.mrb[0].mxu0
    %v811 = vpop.f32.mrb[0].mxu0
    %v812 = vadd.f32 0.0, %v811
    %v813 = vpop.f32.mrb[0].mxu0
    %814 = vmatprep.mubr.bf16.mxu0 0
    %815 = vmatmul.mubr.bf16.gmra.mrb[0].mxu0 %v69
    %v816 = vpop.f32.mrb[0].mxu0
    %v817 = vadd.f32 0.0, %v816
    %v818 = vpop.f32.mrb[0].mxu0
    %v819 = vpop.f32.mrb[0].mxu0
    %v820 = vadd.f32 0.0, %v819
    %v821 = vpop.f32.mrb[0].mxu0
    %822 = vdwg.mxu0
    %v823 = vpack.c.bf16 %v109, %v106
    %v824 = vpack.c.bf16 %v117, %v114
    %v825 = vpack.c.bf16 %v170, %v167
    %v826 = vpack.c.bf16 %v178, %v175
    %v827 = vpack.c.bf16 %v231, %v228
    %v828 = vpack.c.bf16 %v239, %v236
    %v829 = vpack.c.bf16 %v292, %v289
    %v830 = vpack.c.bf16 %v300, %v297
    %v831 = vpack.c.bf16 %v369, %v366
    %v832 = vpack.c.bf16 %v377, %v374
    %v833 = vpack.c.bf16 %v430, %v427
    %v834 = vpack.c.bf16 %v438, %v435
    %v835 = vpack.c.bf16 %v491, %v488
    %v836 = vpack.c.bf16 %v499, %v496
    %v837 = vpack.c.bf16 %v552, %v549
    %v838 = vpack.c.bf16 %v560, %v557
    %v839 = vpack.c.bf16 %v629, %v626
    %v840 = vpack.c.bf16 %v637, %v634
    %v841 = vpack.c.bf16 %v690, %v687
    %v842 = vpack.c.bf16 %v698, %v695
    %v843 = vpack.c.bf16 %v751, %v748
    %v844 = vpack.c.bf16 %v759, %v756
    %v845 = vpack.c.bf16 %v812, %v809
    %v846 = vpack.c.bf16 %v820, %v817
    %vm847 = vcmask 64512
    %v849 = vsel %vm847, %v823, 0
    %v852 = vsel %vm847, %v831, 0
    %854 = vmatprep.subr.bf16.mxu0 0
    %855 = vmatpush1.bf16.xpose.msra.mxu0 %v852
    %856 = vmatprep.subr.bf16.mxu0 0
    %857 = vmatpush1.bf16.xpose.msra.mxu0 0
    %858 = vmatprep.subr.bf16.mxu0 0
    %859 = vmatpush1.bf16.xpose.msra.mxu0 0
    %860 = vmatprep.subr.bf16.mxu0 0
    %861 = vmatpush1.bf16.xpose.msra.mxu0 0
    %862 = vmatprep.subr.bf16.mxu0 0
    %863 = vmatpush1.bf16.xpose.msra.mxu0 0
    %864 = vmatprep.subr.bf16.mxu0 0
    %865 = vmatpush1.bf16.xpose.msra.mxu0 0
    %866 = vmatprep.subr.bf16.mxu0 0
    %867 = vmatpush1.bf16.xpose.msra.mxu0 0
    %868 = vmatprep.subr.bf16.mxu0 0
    %869 = vmatpush1.bf16.xpose.msra.mxu0 0
    %870 = vmatprep.subr.bf16.mxu0 0
    %871 = vmatpush1.bf16.xpose.msra.mxu0 0
    %872 = vmatprep.subr.bf16.mxu0 0
    %873 = vmatpush1.bf16.xpose.msra.mxu0 0
    %874 = vmatprep.subr.bf16.mxu0 0
    %875 = vmatpush1.bf16.xpose.msra.mxu0 0
    %876 = vmatprep.subr.bf16.mxu0 0
    %877 = vmatpush1.bf16.xpose.msra.mxu0 0
    %878 = vmatprep.subr.bf16.mxu0 0
    %879 = vmatpush1.bf16.xpose.msra.mxu0 0
    %880 = vmatprep.subr.bf16.mxu0 0
    %881 = vmatpush1.bf16.xpose.msra.mxu0 0
    %882 = vmatprep.subr.bf16.mxu0 0
    %883 = vmatpush1.bf16.xpose.msra.mxu0 0
    %884 = vmatprep.subr.bf16.mxu0 0
    %885 = vmatpush1.bf16.xpose.msra.mxu0 0
    %886 = vmatprep.mubr.bf16.mxu0 0
    %887 = vmatmul.mubr.bf16.gmra.mrb[0].mxu0 %v849
    %v888 = vpop.f32.mrb[0].mxu0
    %v889 = vadd.f32 0.0, %v888
    %v890 = vpop.f32.mrb[0].mxu0
    %v891 = vpop.f32.mrb[0].mxu0
    %v892 = vadd.f32 0.0, %v891
    %v893 = vpop.f32.mrb[0].mxu0
    %894 = vdwg.mxu0
    %v896 = vsel %vm847, %v824, 0
    %v899 = vsel %vm847, %v832, 0
    %901 = vmatprep.subr.bf16.mxu0 0
    %902 = vmatpush1.bf16.xpose.msra.mxu0 %v899
    %903 = vmatprep.subr.bf16.mxu0 0
    %904 = vmatpush1.bf16.xpose.msra.mxu0 0
    %905 = vmatprep.subr.bf16.mxu0 0
    %906 = vmatpush1.bf16.xpose.msra.mxu0 0
    %907 = vmatprep.subr.bf16.mxu0 0
    %908 = vmatpush1.bf16.xpose.msra.mxu0 0
    %909 = vmatprep.subr.bf16.mxu0 0
    %910 = vmatpush1.bf16.xpose.msra.mxu0 0
    %911 = vmatprep.subr.bf16.mxu0 0
    %912 = vmatpush1.bf16.xpose.msra.mxu0 0
    %913 = vmatprep.subr.bf16.mxu0 0
    %914 = vmatpush1.bf16.xpose.msra.mxu0 0
    %915 = vmatprep.subr.bf16.mxu0 0
    %916 = vmatpush1.bf16.xpose.msra.mxu0 0
    %917 = vmatprep.subr.bf16.mxu0 0
    %918 = vmatpush1.bf16.xpose.msra.mxu0 0
    %919 = vmatprep.subr.bf16.mxu0 0
    %920 = vmatpush1.bf16.xpose.msra.mxu0 0
    %921 = vmatprep.subr.bf16.mxu0 0
    %922 = vmatpush1.bf16.xpose.msra.mxu0 0
    %923 = vmatprep.subr.bf16.mxu0 0
    %924 = vmatpush1.bf16.xpose.msra.mxu0 0
    %925 = vmatprep.subr.bf16.mxu0 0
    %926 = vmatpush1.bf16.xpose.msra.mxu0 0
    %927 = vmatprep.subr.bf16.mxu0 0
    %928 = vmatpush1.bf16.xpose.msra.mxu0 0
    %929 = vmatprep.subr.bf16.mxu0 0
    %930 = vmatpush1.bf16.xpose.msra.mxu0 0
    %931 = vmatprep.subr.bf16.mxu0 0
    %932 = vmatpush1.bf16.xpose.msra.mxu0 0
    %933 = vmatprep.mubr.bf16.mxu0 0
    %934 = vmatmul.mubr.bf16.gmra.mrb[0].mxu0 %v896
    %v935 = vpop.f32.mrb[0].mxu0
    %v936 = vadd.f32 0.0, %v935
    %v937 = vpop.f32.mrb[0].mxu0
    %v938 = vpop.f32.mrb[0].mxu0
    %v939 = vadd.f32 0.0, %v938
    %v940 = vpop.f32.mrb[0].mxu0
    %941 = vdwg.mxu0
    %v943 = vsel %vm847, %v825, 0
    %v946 = vsel %vm847, %v833, 0
    %948 = vmatprep.subr.bf16.mxu0 0
    %949 = vmatpush1.bf16.xpose.msra.mxu0 %v946
    %950 = vmatprep.subr.bf16.mxu0 0
    %951 = vmatpush1.bf16.xpose.msra.mxu0 0
    %952 = vmatprep.subr.bf16.mxu0 0
    %953 = vmatpush1.bf16.xpose.msra.mxu0 0
    %954 = vmatprep.subr.bf16.mxu0 0
    %955 = vmatpush1.bf16.xpose.msra.mxu0 0
    %956 = vmatprep.subr.bf16.mxu0 0
    %957 = vmatpush1.bf16.xpose.msra.mxu0 0
    %958 = vmatprep.subr.bf16.mxu0 0
    %959 = vmatpush1.bf16.xpose.msra.mxu0 0
    %960 = vmatprep.subr.bf16.mxu0 0
    %961 = vmatpush1.bf16.xpose.msra.mxu0 0
    %962 = vmatprep.subr.bf16.mxu0 0
    %963 = vmatpush1.bf16.xpose.msra.mxu0 0
    %964 = vmatprep.subr.bf16.mxu0 0
    %965 = vmatpush1.bf16.xpose.msra.mxu0 0
    %966 = vmatprep.subr.bf16.mxu0 0
    %967 = vmatpush1.bf16.xpose.msra.mxu0 0
    %968 = vmatprep.subr.bf16.mxu0 0
    %969 = vmatpush1.bf16.xpose.msra.mxu0 0
    %970 = vmatprep.subr.bf16.mxu0 0
    %971 = vmatpush1.bf16.xpose.msra.mxu0 0
    %972 = vmatprep.subr.bf16.mxu0 0
    %973 = vmatpush1.bf16.xpose.msra.mxu0 0
    %974 = vmatprep.subr.bf16.mxu0 0
    %975 = vmatpush1.bf16.xpose.msra.mxu0 0
    %976 = vmatprep.subr.bf16.mxu0 0
    %977 = vmatpush1.bf16.xpose.msra.mxu0 0
    %978 = vmatprep.subr.bf16.mxu0 0
    %979 = vmatpush1.bf16.xpose.msra.mxu0 0
    %980 = vmatprep.mubr.bf16.mxu0 0
    %981 = vmatmul.mubr.bf16.gmra.mrb[0].mxu0 %v943
    %v982 = vpop.f32.mrb[0].mxu0
    %v983 = vadd.f32 0.0, %v982
    %v984 = vpop.f32.mrb[0].mxu0
    %v985 = vpop.f32.mrb[0].mxu0
    %v986 = vadd.f32 0.0, %v985
    %v987 = vpop.f32.mrb[0].mxu0
    %988 = vdwg.mxu0
    %v990 = vsel %vm847, %v826, 0
    %v993 = vsel %vm847, %v834, 0
    %995 = vmatprep.subr.bf16.mxu0 0
    %996 = vmatpush1.bf16.xpose.msra.mxu0 %v993
    %997 = vmatprep.subr.bf16.mxu0 0
    %998 = vmatpush1.bf16.xpose.msra.mxu0 0
    %999 = vmatprep.subr.bf16.mxu0 0
    %1000 = vmatpush1.bf16.xpose.msra.mxu0 0
    %1001 = vmatprep.subr.bf16.mxu0 0
    %1002 = vmatpush1.bf16.xpose.msra.mxu0 0
    %1003 = vmatprep.subr.bf16.mxu0 0
    %1004 = vmatpush1.bf16.xpose.msra.mxu0 0
    %1005 = vmatprep.subr.bf16.mxu0 0
    %1006 = vmatpush1.bf16.xpose.msra.mxu0 0
    %1007 = vmatprep.subr.bf16.mxu0 0
    %1008 = vmatpush1.bf16.xpose.msra.mxu0 0
    %1009 = vmatprep.subr.bf16.mxu0 0
    %1010 = vmatpush1.bf16.xpose.msra.mxu0 0
    %1011 = vmatprep.subr.bf16.mxu0 0
    %1012 = vmatpush1.bf16.xpose.msra.mxu0 0
    %1013 = vmatprep.subr.bf16.mxu0 0
    %1014 = vmatpush1.bf16.xpose.msra.mxu0 0
    %1015 = vmatprep.subr.bf16.mxu0 0
    %1016 = vmatpush1.bf16.xpose.msra.mxu0 0
    %1017 = vmatprep.subr.bf16.mxu0 0
    %1018 = vmatpush1.bf16.xpose.msra.mxu0 0
    %1019 = vmatprep.subr.bf16.mxu0 0
    %1020 = vmatpush1.bf16.xpose.msra.mxu0 0
    %1021 = vmatprep.subr.bf16.mxu0 0
    %1022 = vmatpush1.bf16.xpose.msra.mxu0 0
    %1023 = vmatprep.subr.bf16.mxu0 0
    %1024 = vmatpush1.bf16.xpose.msra.mxu0 0
    %1025 = vmatprep.subr.bf16.mxu0 0
    %1026 = vmatpush1.bf16.xpose.msra.mxu0 0
    %1027 = vmatprep.mubr.bf16.mxu0 0
    %1028 = vmatmul.mubr.bf16.gmra.mrb[0].mxu0 %v990
    %v1029 = vpop.f32.mrb[0].mxu0
    %v1030 = vadd.f32 0.0, %v1029
    %v1031 = vpop.f32.mrb[0].mxu0
    %v1032 = vpop.f32.mrb[0].mxu0
    %v1033 = vadd.f32 0.0, %v1032
    %v1034 = vpop.f32.mrb[0].mxu0
    %1035 = vdwg.mxu0
    %v1037 = vsel %vm847, %v827, 0
    %v1040 = vsel %vm847, %v835, 0
    %1042 = vmatprep.subr.bf16.mxu0 0
    %1043 = vmatpush1.bf16.xpose.msra.mxu0 %v1040
    %1044 = vmatprep.subr.bf16.mxu0 0
    %1045 = vmatpush1.bf16.xpose.msra.mxu0 0
    %1046 = vmatprep.subr.bf16.mxu0 0
    %1047 = vmatpush1.bf16.xpose.msra.mxu0 0
    %1048 = vmatprep.subr.bf16.mxu0 0
    %1049 = vmatpush1.bf16.xpose.msra.mxu0 0
    %1050 = vmatprep.subr.bf16.mxu0 0
    %1051 = vmatpush1.bf16.xpose.msra.mxu0 0
    %1052 = vmatprep.subr.bf16.mxu0 0
    %1053 = vmatpush1.bf16.xpose.msra.mxu0 0
    %1054 = vmatprep.subr.bf16.mxu0 0
    %1055 = vmatpush1.bf16.xpose.msra.mxu0 0
    %1056 = vmatprep.subr.bf16.mxu0 0
    %1057 = vmatpush1.bf16.xpose.msra.mxu0 0
    %1058 = vmatprep.subr.bf16.mxu0 0
    %1059 = vmatpush1.bf16.xpose.msra.mxu0 0
    %1060 = vmatprep.subr.bf16.mxu0 0
    %1061 = vmatpush1.bf16.xpose.msra.mxu0 0
    %1062 = vmatprep.subr.bf16.mxu0 0
    %1063 = vmatpush1.bf16.xpose.msra.mxu0 0
    %1064 = vmatprep.subr.bf16.mxu0 0
    %1065 = vmatpush1.bf16.xpose.msra.mxu0 0
    %1066 = vmatprep.subr.bf16.mxu0 0
    %1067 = vmatpush1.bf16.xpose.msra.mxu0 0
    %1068 = vmatprep.subr.bf16.mxu0 0
    %1069 = vmatpush1.bf16.xpose.msra.mxu0 0
    %1070 = vmatprep.subr.bf16.mxu0 0
    %1071 = vmatpush1.bf16.xpose.msra.mxu0 0
    %1072 = vmatprep.subr.bf16.mxu0 0
    %1073 = vmatpush1.bf16.xpose.msra.mxu0 0
    %1074 = vmatprep.mubr.bf16.mxu0 0
    %1075 = vmatmul.mubr.bf16.gmra.mrb[0].mxu0 %v1037
    %v1076 = vpop.f32.mrb[0].mxu0
    %v1077 = vadd.f32 0.0, %v1076
    %v1078 = vpop.f32.mrb[0].mxu0
    %v1079 = vpop.f32.mrb[0].mxu0
    %v1080 = vadd.f32 0.0, %v1079
    %v1081 = vpop.f32.mrb[0].mxu0
    %1082 = vdwg.mxu0
    %v1084 = vsel %vm847, %v828, 0
    %v1087 = vsel %vm847, %v836, 0
    %1089 = vmatprep.subr.bf16.mxu0 0
    %1090 = vmatpush1.bf16.xpose.msra.mxu0 %v1087
    %1091 = vmatprep.subr.bf16.mxu0 0
    %1092 = vmatpush1.bf16.xpose.msra.mxu0 0
    %1093 = vmatprep.subr.bf16.mxu0 0
    %1094 = vmatpush1.bf16.xpose.msra.mxu0 0
    %1095 = vmatprep.subr.bf16.mxu0 0
    %1096 = vmatpush1.bf16.xpose.msra.mxu0 0
    %1097 = vmatprep.subr.bf16.mxu0 0
    %1098 = vmatpush1.bf16.xpose.msra.mxu0 0
    %1099 = vmatprep.subr.bf16.mxu0 0
    %1100 = vmatpush1.bf16.xpose.msra.mxu0 0
    %1101 = vmatprep.subr.bf16.mxu0 0
    %1102 = vmatpush1.bf16.xpose.msra.mxu0 0
    %1103 = vmatprep.subr.bf16.mxu0 0
    %1104 = vmatpush1.bf16.xpose.msra.mxu0 0
    %1105 = vmatprep.subr.bf16.mxu0 0
    %1106 = vmatpush1.bf16.xpose.msra.mxu0 0
    %1107 = vmatprep.subr.bf16.mxu0 0
    %1108 = vmatpush1.bf16.xpose.msra.mxu0 0
    %1109 = vmatprep.subr.bf16.mxu0 0
    %1110 = vmatpush1.bf16.xpose.msra.mxu0 0
    %1111 = vmatprep.subr.bf16.mxu0 0
    %1112 = vmatpush1.bf16.xpose.msra.mxu0 0
    %1113 = vmatprep.subr.bf16.mxu0 0
    %1114 = vmatpush1.bf16.xpose.msra.mxu0 0
    %1115 = vmatprep.subr.bf16.mxu0 0
    %1116 = vmatpush1.bf16.xpose.msra.mxu0 0
    %1117 = vmatprep.subr.bf16.mxu0 0
    %1118 = vmatpush1.bf16.xpose.msra.mxu0 0
    %1119 = vmatprep.subr.bf16.mxu0 0
    %1120 = vmatpush1.bf16.xpose.msra.mxu0 0
    %1121 = vmatprep.mubr.bf16.mxu0 0
    %1122 = vmatmul.mubr.bf16.gmra.mrb[0].mxu0 %v1084
    %v1123 = vpop.f32.mrb[0].mxu0
    %v1124 = vadd.f32 0.0, %v1123
    %v1125 = vpop.f32.mrb[0].mxu0
    %v1126 = vpop.f32.mrb[0].mxu0
    %v1127 = vadd.f32 0.0, %v1126
    %v1128 = vpop.f32.mrb[0].mxu0
    %1129 = vdwg.mxu0
    %v1131 = vsel %vm847, %v829, 0
    %v1134 = vsel %vm847, %v837, 0
    %1136 = vmatprep.subr.bf16.mxu0 0
    %1137 = vmatpush1.bf16.xpose.msra.mxu0 %v1134
    %1138 = vmatprep.subr.bf16.mxu0 0
    %1139 = vmatpush1.bf16.xpose.msra.mxu0 0
    %1140 = vmatprep.subr.bf16.mxu0 0
    %1141 = vmatpush1.bf16.xpose.msra.mxu0 0
    %1142 = vmatprep.subr.bf16.mxu0 0
    %1143 = vmatpush1.bf16.xpose.msra.mxu0 0
    %1144 = vmatprep.subr.bf16.mxu0 0
    %1145 = vmatpush1.bf16.xpose.msra.mxu0 0
    %1146 = vmatprep.subr.bf16.mxu0 0
    %1147 = vmatpush1.bf16.xpose.msra.mxu0 0
    %1148 = vmatprep.subr.bf16.mxu0 0
    %1149 = vmatpush1.bf16.xpose.msra.mxu0 0
    %1150 = vmatprep.subr.bf16.mxu0 0
    %1151 = vmatpush1.bf16.xpose.msra.mxu0 0
    %1152 = vmatprep.subr.bf16.mxu0 0
    %1153 = vmatpush1.bf16.xpose.msra.mxu0 0
    %1154 = vmatprep.subr.bf16.mxu0 0
    %1155 = vmatpush1.bf16.xpose.msra.mxu0 0
    %1156 = vmatprep.subr.bf16.mxu0 0
    %1157 = vmatpush1.bf16.xpose.msra.mxu0 0
    %1158 = vmatprep.subr.bf16.mxu0 0
    %1159 = vmatpush1.bf16.xpose.msra.mxu0 0
    %1160 = vmatprep.subr.bf16.mxu0 0
    %1161 = vmatpush1.bf16.xpose.msra.mxu0 0
    %1162 = vmatprep.subr.bf16.mxu0 0
    %1163 = vmatpush1.bf16.xpose.msra.mxu0 0
    %1164 = vmatprep.subr.bf16.mxu0 0
    %1165 = vmatpush1.bf16.xpose.msra.mxu0 0
    %1166 = vmatprep.subr.bf16.mxu0 0
    %1167 = vmatpush1.bf16.xpose.msra.mxu0 0
    %1168 = vmatprep.mubr.bf16.mxu0 0
    %1169 = vmatmul.mubr.bf16.gmra.mrb[0].mxu0 %v1131
    %v1170 = vpop.f32.mrb[0].mxu0
    %v1171 = vadd.f32 0.0, %v1170
    %v1172 = vpop.f32.mrb[0].mxu0
    %v1173 = vpop.f32.mrb[0].mxu0
    %v1174 = vadd.f32 0.0, %v1173
    %v1175 = vpop.f32.mrb[0].mxu0
    %1176 = vdwg.mxu0
    %v1178 = vsel %vm847, %v830, 0
    %v1181 = vsel %vm847, %v838, 0
    %1183 = vmatprep.subr.bf16.mxu0 0
    %1184 = vmatpush1.bf16.xpose.msra.mxu0 %v1181
    %1185 = vmatprep.subr.bf16.mxu0 0
    %1186 = vmatpush1.bf16.xpose.msra.mxu0 0
    %1187 = vmatprep.subr.bf16.mxu0 0
    %1188 = vmatpush1.bf16.xpose.msra.mxu0 0
    %1189 = vmatprep.subr.bf16.mxu0 0
    %1190 = vmatpush1.bf16.xpose.msra.mxu0 0
    %1191 = vmatprep.subr.bf16.mxu0 0
    %1192 = vmatpush1.bf16.xpose.msra.mxu0 0
    %1193 = vmatprep.subr.bf16.mxu0 0
    %1194 = vmatpush1.bf16.xpose.msra.mxu0 0
    %1195 = vmatprep.subr.bf16.mxu0 0
    %1196 = vmatpush1.bf16.xpose.msra.mxu0 0
    %1197 = vmatprep.subr.bf16.mxu0 0
    %1198 = vmatpush1.bf16.xpose.msra.mxu0 0
    %1199 = vmatprep.subr.bf16.mxu0 0
    %1200 = vmatpush1.bf16.xpose.msra.mxu0 0
    %1201 = vmatprep.subr.bf16.mxu0 0
    %1202 = vmatpush1.bf16.xpose.msra.mxu0 0
    %1203 = vmatprep.subr.bf16.mxu0 0
    %1204 = vmatpush1.bf16.xpose.msra.mxu0 0
    %1205 = vmatprep.subr.bf16.mxu0 0
    %1206 = vmatpush1.bf16.xpose.msra.mxu0 0
    %1207 = vmatprep.subr.bf16.mxu0 0
    %1208 = vmatpush1.bf16.xpose.msra.mxu0 0
    %1209 = vmatprep.subr.bf16.mxu0 0
    %1210 = vmatpush1.bf16.xpose.msra.mxu0 0
    %1211 = vmatprep.subr.bf16.mxu0 0
    %1212 = vmatpush1.bf16.xpose.msra.mxu0 0
    %1213 = vmatprep.subr.bf16.mxu0 0
    %1214 = vmatpush1.bf16.xpose.msra.mxu0 0
    %1215 = vmatprep.mubr.bf16.mxu0 0
    %1216 = vmatmul.mubr.bf16.gmra.mrb[0].mxu0 %v1178
    %v1217 = vpop.f32.mrb[0].mxu0
    %v1218 = vadd.f32 0.0, %v1217
    %v1219 = vpop.f32.mrb[0].mxu0
    %v1220 = vpop.f32.mrb[0].mxu0
    %v1221 = vadd.f32 0.0, %v1220
    %v1222 = vpop.f32.mrb[0].mxu0
    %1223 = vdwg.mxu0
    %vm1224 = vcmask 130048
    %v1225 = vsel %vm1224, %v889, -inf
    %1226 = vmax.xlane.f32.xlu0 %v1225
    %v1227 = vpop.xlane.xlu0 %1226
    %v1228 = vsel %vm1224, %v892, -inf
    %1229 = vmax.xlane.f32.xlu0 %v1228
    %v1230 = vpop.xlane.xlu0 %1229
    %v1231 = vsel %vm1224, %v936, -inf
    %1232 = vmax.xlane.f32.xlu0 %v1231
    %v1233 = vpop.xlane.xlu0 %1232
    %v1234 = vsel %vm1224, %v939, -inf
    %1235 = vmax.xlane.f32.xlu0 %v1234
    %v1236 = vpop.xlane.xlu0 %1235
    %v1237 = vsel %vm1224, %v983, -inf
    %1238 = vmax.xlane.f32.xlu0 %v1237
    %v1239 = vpop.xlane.xlu0 %1238
    %v1240 = vsel %vm1224, %v986, -inf
    %1241 = vmax.xlane.f32.xlu0 %v1240
    %v1242 = vpop.xlane.xlu0 %1241
    %v1243 = vsel %vm1224, %v1030, -inf
    %1244 = vmax.xlane.f32.xlu0 %v1243
    %v1245 = vpop.xlane.xlu0 %1244
    %v1246 = vsel %vm1224, %v1033, -inf
    %1247 = vmax.xlane.f32.xlu0 %v1246
    %v1248 = vpop.xlane.xlu0 %1247
    %v1249 = vsel %vm1224, %v1077, -inf
    %1250 = vmax.xlane.f32.xlu0 %v1249
    %v1251 = vpop.xlane.xlu0 %1250
    %v1252 = vsel %vm1224, %v1080, -inf
    %1253 = vmax.xlane.f32.xlu0 %v1252
    %v1254 = vpop.xlane.xlu0 %1253
    %v1255 = vsel %vm1224, %v1124, -inf
    %1256 = vmax.xlane.f32.xlu0 %v1255
    %v1257 = vpop.xlane.xlu0 %1256
    %v1258 = vsel %vm1224, %v1127, -inf
    %1259 = vmax.xlane.f32.xlu0 %v1258
    %v1260 = vpop.xlane.xlu0 %1259
    %v1261 = vsel %vm1224, %v1171, -inf
    %1262 = vmax.xlane.f32.xlu0 %v1261
    %v1263 = vpop.xlane.xlu0 %1262
    %v1264 = vsel %vm1224, %v1174, -inf
    %1265 = vmax.xlane.f32.xlu0 %v1264
    %v1266 = vpop.xlane.xlu0 %1265
    %v1267 = vsel %vm1224, %v1218, -inf
    %1268 = vmax.xlane.f32.xlu0 %v1267
    %v1269 = vpop.xlane.xlu0 %1268
    %v1270 = vsel %vm1224, %v1221, -inf
    %1271 = vmax.xlane.f32.xlu0 %v1270
    %v1272 = vpop.xlane.xlu0 %1271
    %v1273 = vsub.f32 %v889, %v1227
    %v1274 = vsub.f32 %v892, %v1230
    %v1275 = vsub.f32 %v936, %v1233
    %v1276 = vsub.f32 %v939, %v1236
    %v1277 = vsub.f32 %v983, %v1239
    %v1278 = vsub.f32 %v986, %v1242
    %v1279 = vsub.f32 %v1030, %v1245
    %v1280 = vsub.f32 %v1033, %v1248
    %v1281 = vsub.f32 %v1077, %v1251
    %v1282 = vsub.f32 %v1080, %v1254
    %v1283 = vsub.f32 %v1124, %v1257
    %v1284 = vsub.f32 %v1127, %v1260
    %v1285 = vsub.f32 %v1171, %v1263
    %v1286 = vsub.f32 %v1174, %v1266
    %v1287 = vsub.f32 %v1218, %v1269
    %v1288 = vsub.f32 %v1221, %v1272
    %v1289 = vmul.f32 %v1273, 1.442695
    %v1290 = vpow.pop %v1289
    %v1291 = vmul.f32 %v1274, 1.442695
    %v1292 = vpow.pop %v1291
    %v1293 = vmul.f32 %v1275, 1.442695
    %v1294 = vpow.pop %v1293
    %v1295 = vmul.f32 %v1276, 1.442695
    %v1296 = vpow.pop %v1295
    %v1297 = vmul.f32 %v1277, 1.442695
    %v1298 = vpow.pop %v1297
    %v1299 = vmul.f32 %v1278, 1.442695
    %v1300 = vpow.pop %v1299
    %v1301 = vmul.f32 %v1279, 1.442695
    %v1302 = vpow.pop %v1301
    %v1303 = vmul.f32 %v1280, 1.442695
    %v1304 = vpow.pop %v1303
    %v1305 = vmul.f32 %v1281, 1.442695
    %v1306 = vpow.pop %v1305
    %v1307 = vmul.f32 %v1282, 1.442695
    %v1308 = vpow.pop %v1307
    %v1309 = vmul.f32 %v1283, 1.442695
    %v1310 = vpow.pop %v1309
    %v1311 = vmul.f32 %v1284, 1.442695
    %v1312 = vpow.pop %v1311
    %v1313 = vmul.f32 %v1285, 1.442695
    %v1314 = vpow.pop %v1313
    %v1315 = vmul.f32 %v1286, 1.442695
    %v1316 = vpow.pop %v1315
    %v1317 = vmul.f32 %v1287, 1.442695
    %v1318 = vpow.pop %v1317
    %v1319 = vmul.f32 %v1288, 1.442695
    %v1320 = vpow.pop %v1319
    %v1321 = vsel %vm1224, %v1290, 0.0
    %1322 = vadd.xlane.f32.xlu0 %v1321
    %v1323 = vpop.xlane.xlu0 %1322
    %v1324 = vsel %vm1224, %v1292, 0.0
    %1325 = vadd.xlane.f32.xlu0 %v1324
    %v1326 = vpop.xlane.xlu0 %1325
    %v1327 = vsel %vm1224, %v1294, 0.0
    %1328 = vadd.xlane.f32.xlu0 %v1327
    %v1329 = vpop.xlane.xlu0 %1328
    %v1330 = vsel %vm1224, %v1296, 0.0
    %1331 = vadd.xlane.f32.xlu0 %v1330
    %v1332 = vpop.xlane.xlu0 %1331
    %v1333 = vsel %vm1224, %v1298, 0.0
    %1334 = vadd.xlane.f32.xlu0 %v1333
    %v1335 = vpop.xlane.xlu0 %1334
    %v1336 = vsel %vm1224, %v1300, 0.0
    %1337 = vadd.xlane.f32.xlu0 %v1336
    %v1338 = vpop.xlane.xlu0 %1337
    %v1339 = vsel %vm1224, %v1302, 0.0
    %1340 = vadd.xlane.f32.xlu0 %v1339
    %v1341 = vpop.xlane.xlu0 %1340
    %v1342 = vsel %vm1224, %v1304, 0.0
    %1343 = vadd.xlane.f32.xlu0 %v1342
    %v1344 = vpop.xlane.xlu0 %1343
    %v1345 = vsel %vm1224, %v1306, 0.0
    %1346 = vadd.xlane.f32.xlu0 %v1345
    %v1347 = vpop.xlane.xlu0 %1346
    %v1348 = vsel %vm1224, %v1308, 0.0
    %1349 = vadd.xlane.f32.xlu0 %v1348
    %v1350 = vpop.xlane.xlu0 %1349
    %v1351 = vsel %vm1224, %v1310, 0.0
    %1352 = vadd.xlane.f32.xlu0 %v1351
    %v1353 = vpop.xlane.xlu0 %1352
    %v1354 = vsel %vm1224, %v1312, 0.0
    %1355 = vadd.xlane.f32.xlu0 %v1354
    %v1356 = vpop.xlane.xlu0 %1355
    %v1357 = vsel %vm1224, %v1314, 0.0
    %1358 = vadd.xlane.f32.xlu0 %v1357
    %v1359 = vpop.xlane.xlu0 %1358
    %v1360 = vsel %vm1224, %v1316, 0.0
    %1361 = vadd.xlane.f32.xlu0 %v1360
    %v1362 = vpop.xlane.xlu0 %1361
    %v1363 = vsel %vm1224, %v1318, 0.0
    %1364 = vadd.xlane.f32.xlu0 %v1363
    %v1365 = vpop.xlane.xlu0 %1364
    %v1366 = vsel %vm1224, %v1320, 0.0
    %1367 = vadd.xlane.f32.xlu0 %v1366
    %v1368 = vpop.xlane.xlu0 %1367
    %v1369 = vrcp.pop %v1323
    %v1370 = vrcp.pop %v1326
    %v1371 = vrcp.pop %v1329
    %v1372 = vrcp.pop %v1332
    %v1373 = vrcp.pop %v1335
    %v1374 = vrcp.pop %v1338
    %v1375 = vrcp.pop %v1341
    %v1376 = vrcp.pop %v1344
    %v1377 = vrcp.pop %v1347
    %v1378 = vrcp.pop %v1350
    %v1379 = vrcp.pop %v1353
    %v1380 = vrcp.pop %v1356
    %v1381 = vrcp.pop %v1359
    %v1382 = vrcp.pop %v1362
    %v1383 = vrcp.pop %v1365
    %v1384 = vrcp.pop %v1368
    %v1385 = vmul.f32 %v1290, %v1369
    %v1386 = vmul.f32 %v1292, %v1370
    %v1387 = vmul.f32 %v1294, %v1371
    %v1388 = vmul.f32 %v1296, %v1372
    %v1389 = vmul.f32 %v1298, %v1373
    %v1390 = vmul.f32 %v1300, %v1374
    %v1391 = vmul.f32 %v1302, %v1375
    %v1392 = vmul.f32 %v1304, %v1376
    %v1393 = vmul.f32 %v1306, %v1377
    %v1394 = vmul.f32 %v1308, %v1378
    %v1395 = vmul.f32 %v1310, %v1379
    %v1396 = vmul.f32 %v1312, %v1380
    %v1397 = vmul.f32 %v1314, %v1381
    %v1398 = vmul.f32 %v1316, %v1382
    %v1399 = vmul.f32 %v1318, %v1383
    %v1400 = vmul.f32 %v1320, %v1384
    %v1401 = vpack.c.bf16 %v1386, %v1385
    %v1402 = vpack.c.bf16 %v1388, %v1387
    %v1403 = vpack.c.bf16 %v1390, %v1389
    %v1404 = vpack.c.bf16 %v1392, %v1391
    %v1405 = vpack.c.bf16 %v1394, %v1393
    %v1406 = vpack.c.bf16 %v1396, %v1395
    %v1407 = vpack.c.bf16 %v1398, %v1397
    %v1408 = vpack.c.bf16 %v1400, %v1399
    %v1410 = vsel %vm1224, %v1401, 0
    %1412 = vmatprep.subr.bf16.mxu0 0
    %1413 = vmatpush1.bf16.msra.mxu0 %v839
    %1414 = vmatprep.subr.bf16.mxu0 0
    %1415 = vmatpush1.bf16.msra.mxu0 0
    %1416 = vmatprep.subr.bf16.mxu0 0
    %1417 = vmatpush1.bf16.msra.mxu0 0
    %1418 = vmatprep.subr.bf16.mxu0 0
    %1419 = vmatpush1.bf16.msra.mxu0 0
    %1420 = vmatprep.subr.bf16.mxu0 0
    %1421 = vmatpush1.bf16.msra.mxu0 0
    %1422 = vmatprep.subr.bf16.mxu0 0
    %1423 = vmatpush1.bf16.msra.mxu0 0
    %1424 = vmatprep.subr.bf16.mxu0 0
    %1425 = vmatpush1.bf16.msra.mxu0 0
    %1426 = vmatprep.subr.bf16.mxu0 0
    %1427 = vmatpush1.bf16.msra.mxu0 0
    %1428 = vmatprep.subr.bf16.mxu0 0
    %1429 = vmatpush1.bf16.msra.mxu0 0
    %1430 = vmatprep.subr.bf16.mxu0 0
    %1431 = vmatpush1.bf16.msra.mxu0 0
    %1432 = vmatprep.subr.bf16.mxu0 0
    %1433 = vmatpush1.bf16.msra.mxu0 0
    %1434 = vmatprep.subr.bf16.mxu0 0
    %1435 = vmatpush1.bf16.msra.mxu0 0
    %1436 = vmatprep.subr.bf16.mxu0 0
    %1437 = vmatpush1.bf16.msra.mxu0 0
    %1438 = vmatprep.subr.bf16.mxu0 0
    %1439 = vmatpush1.bf16.msra.mxu0 0
    %1440 = vmatprep.subr.bf16.mxu0 0
    %1441 = vmatpush1.bf16.msra.mxu0 0
    %1442 = vmatprep.subr.bf16.mxu0 0
    %1443 = vmatpush1.bf16.msra.mxu0 0
    %1444 = vmatprep.mubr.bf16.mxu0 0
    %1445 = vmatmul.mubr.bf16.gmra.mrb[0].mxu0 %v1410
    %v1446 = vpop.f32.mrb[0].mxu0
    %v1447 = vadd.f32 0.0, %v1446
    %v1448 = vpop.f32.mrb[0].mxu0
    %v1449 = vpop.f32.mrb[0].mxu0
    %v1450 = vadd.f32 0.0, %v1449
    %v1451 = vpop.f32.mrb[0].mxu0
    %1452 = vdwg.mxu0
    %v1454 = vsel %vm1224, %v1402, 0
    %1456 = vmatprep.subr.bf16.mxu0 0
    %1457 = vmatpush1.bf16.msra.mxu0 %v840
    %1458 = vmatprep.subr.bf16.mxu0 0
    %1459 = vmatpush1.bf16.msra.mxu0 0
    %1460 = vmatprep.subr.bf16.mxu0 0
    %1461 = vmatpush1.bf16.msra.mxu0 0
    %1462 = vmatprep.subr.bf16.mxu0 0
    %1463 = vmatpush1.bf16.msra.mxu0 0
    %1464 = vmatprep.subr.bf16.mxu0 0
    %1465 = vmatpush1.bf16.msra.mxu0 0
    %1466 = vmatprep.subr.bf16.mxu0 0
    %1467 = vmatpush1.bf16.msra.mxu0 0
    %1468 = vmatprep.subr.bf16.mxu0 0
    %1469 = vmatpush1.bf16.msra.mxu0 0
    %1470 = vmatprep.subr.bf16.mxu0 0
    %1471 = vmatpush1.bf16.msra.mxu0 0
    %1472 = vmatprep.subr.bf16.mxu0 0
    %1473 = vmatpush1.bf16.msra.mxu0 0
    %1474 = vmatprep.subr.bf16.mxu0 0
    %1475 = vmatpush1.bf16.msra.mxu0 0
    %1476 = vmatprep.subr.bf16.mxu0 0
    %1477 = vmatpush1.bf16.msra.mxu0 0
    %1478 = vmatprep.subr.bf16.mxu0 0
    %1479 = vmatpush1.bf16.msra.mxu0 0
    %1480 = vmatprep.subr.bf16.mxu0 0
    %1481 = vmatpush1.bf16.msra.mxu0 0
    %1482 = vmatprep.subr.bf16.mxu0 0
    %1483 = vmatpush1.bf16.msra.mxu0 0
    %1484 = vmatprep.subr.bf16.mxu0 0
    %1485 = vmatpush1.bf16.msra.mxu0 0
    %1486 = vmatprep.subr.bf16.mxu0 0
    %1487 = vmatpush1.bf16.msra.mxu0 0
    %1488 = vmatprep.mubr.bf16.mxu0 0
    %1489 = vmatmul.mubr.bf16.gmra.mrb[0].mxu0 %v1454
    %v1490 = vpop.f32.mrb[0].mxu0
    %v1491 = vadd.f32 0.0, %v1490
    %v1492 = vpop.f32.mrb[0].mxu0
    %v1493 = vpop.f32.mrb[0].mxu0
    %v1494 = vadd.f32 0.0, %v1493
    %v1495 = vpop.f32.mrb[0].mxu0
    %1496 = vdwg.mxu0
    %v1498 = vsel %vm1224, %v1403, 0
    %1500 = vmatprep.subr.bf16.mxu0 0
    %1501 = vmatpush1.bf16.msra.mxu0 %v841
    %1502 = vmatprep.subr.bf16.mxu0 0
    %1503 = vmatpush1.bf16.msra.mxu0 0
    %1504 = vmatprep.subr.bf16.mxu0 0
    %1505 = vmatpush1.bf16.msra.mxu0 0
    %1506 = vmatprep.subr.bf16.mxu0 0
    %1507 = vmatpush1.bf16.msra.mxu0 0
    %1508 = vmatprep.subr.bf16.mxu0 0
    %1509 = vmatpush1.bf16.msra.mxu0 0
    %1510 = vmatprep.subr.bf16.mxu0 0
    %1511 = vmatpush1.bf16.msra.mxu0 0
    %1512 = vmatprep.subr.bf16.mxu0 0
    %1513 = vmatpush1.bf16.msra.mxu0 0
    %1514 = vmatprep.subr.bf16.mxu0 0
    %1515 = vmatpush1.bf16.msra.mxu0 0
    %1516 = vmatprep.subr.bf16.mxu0 0
    %1517 = vmatpush1.bf16.msra.mxu0 0
    %1518 = vmatprep.subr.bf16.mxu0 0
    %1519 = vmatpush1.bf16.msra.mxu0 0
    %1520 = vmatprep.subr.bf16.mxu0 0
    %1521 = vmatpush1.bf16.msra.mxu0 0
    %1522 = vmatprep.subr.bf16.mxu0 0
    %1523 = vmatpush1.bf16.msra.mxu0 0
    %1524 = vmatprep.subr.bf16.mxu0 0
    %1525 = vmatpush1.bf16.msra.mxu0 0
    %1526 = vmatprep.subr.bf16.mxu0 0
    %1527 = vmatpush1.bf16.msra.mxu0 0
    %1528 = vmatprep.subr.bf16.mxu0 0
    %1529 = vmatpush1.bf16.msra.mxu0 0
    %1530 = vmatprep.subr.bf16.mxu0 0
    %1531 = vmatpush1.bf16.msra.mxu0 0
    %1532 = vmatprep.mubr.bf16.mxu0 0
    %1533 = vmatmul.mubr.bf16.gmra.mrb[0].mxu0 %v1498
    %v1534 = vpop.f32.mrb[0].mxu0
    %v1535 = vadd.f32 0.0, %v1534
    %v1536 = vpop.f32.mrb[0].mxu0
    %v1537 = vpop.f32.mrb[0].mxu0
    %v1538 = vadd.f32 0.0, %v1537
    %v1539 = vpop.f32.mrb[0].mxu0
    %1540 = vdwg.mxu0
    %v1542 = vsel %vm1224, %v1404, 0
    %1544 = vmatprep.subr.bf16.mxu0 0
    %1545 = vmatpush1.bf16.msra.mxu0 %v842
    %1546 = vmatprep.subr.bf16.mxu0 0
    %1547 = vmatpush1.bf16.msra.mxu0 0
    %1548 = vmatprep.subr.bf16.mxu0 0
    %1549 = vmatpush1.bf16.msra.mxu0 0
    %1550 = vmatprep.subr.bf16.mxu0 0
    %1551 = vmatpush1.bf16.msra.mxu0 0
    %1552 = vmatprep.subr.bf16.mxu0 0
    %1553 = vmatpush1.bf16.msra.mxu0 0
    %1554 = vmatprep.subr.bf16.mxu0 0
    %1555 = vmatpush1.bf16.msra.mxu0 0
    %1556 = vmatprep.subr.bf16.mxu0 0
    %1557 = vmatpush1.bf16.msra.mxu0 0
    %1558 = vmatprep.subr.bf16.mxu0 0
    %1559 = vmatpush1.bf16.msra.mxu0 0
    %1560 = vmatprep.subr.bf16.mxu0 0
    %1561 = vmatpush1.bf16.msra.mxu0 0
    %1562 = vmatprep.subr.bf16.mxu0 0
    %1563 = vmatpush1.bf16.msra.mxu0 0
    %1564 = vmatprep.subr.bf16.mxu0 0
    %1565 = vmatpush1.bf16.msra.mxu0 0
    %1566 = vmatprep.subr.bf16.mxu0 0
    %1567 = vmatpush1.bf16.msra.mxu0 0
    %1568 = vmatprep.subr.bf16.mxu0 0
    %1569 = vmatpush1.bf16.msra.mxu0 0
    %1570 = vmatprep.subr.bf16.mxu0 0
    %1571 = vmatpush1.bf16.msra.mxu0 0
    %1572 = vmatprep.subr.bf16.mxu0 0
    %1573 = vmatpush1.bf16.msra.mxu0 0
    %1574 = vmatprep.subr.bf16.mxu0 0
    %1575 = vmatpush1.bf16.msra.mxu0 0
    %1576 = vmatprep.mubr.bf16.mxu0 0
    %1577 = vmatmul.mubr.bf16.gmra.mrb[0].mxu0 %v1542
    %v1578 = vpop.f32.mrb[0].mxu0
    %v1579 = vadd.f32 0.0, %v1578
    %v1580 = vpop.f32.mrb[0].mxu0
    %v1581 = vpop.f32.mrb[0].mxu0
    %v1582 = vadd.f32 0.0, %v1581
    %v1583 = vpop.f32.mrb[0].mxu0
    %1584 = vdwg.mxu0
    %v1586 = vsel %vm1224, %v1405, 0
    %1588 = vmatprep.subr.bf16.mxu0 0
    %1589 = vmatpush1.bf16.msra.mxu0 %v843
    %1590 = vmatprep.subr.bf16.mxu0 0
    %1591 = vmatpush1.bf16.msra.mxu0 0
    %1592 = vmatprep.subr.bf16.mxu0 0
    %1593 = vmatpush1.bf16.msra.mxu0 0
    %1594 = vmatprep.subr.bf16.mxu0 0
    %1595 = vmatpush1.bf16.msra.mxu0 0
    %1596 = vmatprep.subr.bf16.mxu0 0
    %1597 = vmatpush1.bf16.msra.mxu0 0
    %1598 = vmatprep.subr.bf16.mxu0 0
    %1599 = vmatpush1.bf16.msra.mxu0 0
    %1600 = vmatprep.subr.bf16.mxu0 0
    %1601 = vmatpush1.bf16.msra.mxu0 0
    %1602 = vmatprep.subr.bf16.mxu0 0
    %1603 = vmatpush1.bf16.msra.mxu0 0
    %1604 = vmatprep.subr.bf16.mxu0 0
    %1605 = vmatpush1.bf16.msra.mxu0 0
    %1606 = vmatprep.subr.bf16.mxu0 0
    %1607 = vmatpush1.bf16.msra.mxu0 0
    %1608 = vmatprep.subr.bf16.mxu0 0
    %1609 = vmatpush1.bf16.msra.mxu0 0
    %1610 = vmatprep.subr.bf16.mxu0 0
    %1611 = vmatpush1.bf16.msra.mxu0 0
    %1612 = vmatprep.subr.bf16.mxu0 0
    %1613 = vmatpush1.bf16.msra.mxu0 0
    %1614 = vmatprep.subr.bf16.mxu0 0
    %1615 = vmatpush1.bf16.msra.mxu0 0
    %1616 = vmatprep.subr.bf16.mxu0 0
    %1617 = vmatpush1.bf16.msra.mxu0 0
    %1618 = vmatprep.subr.bf16.mxu0 0
    %1619 = vmatpush1.bf16.msra.mxu0 0
    %1620 = vmatprep.mubr.bf16.mxu0 0
    %1621 = vmatmul.mubr.bf16.gmra.mrb[0].mxu0 %v1586
    %v1622 = vpop.f32.mrb[0].mxu0
    %v1623 = vadd.f32 0.0, %v1622
    %v1624 = vpop.f32.mrb[0].mxu0
    %v1625 = vpop.f32.mrb[0].mxu0
    %v1626 = vadd.f32 0.0, %v1625
    %v1627 = vpop.f32.mrb[0].mxu0
    %1628 = vdwg.mxu0
    %v1630 = vsel %vm1224, %v1406, 0
    %1632 = vmatprep.subr.bf16.mxu0 0
    %1633 = vmatpush1.bf16.msra.mxu0 %v844
    %1634 = vmatprep.subr.bf16.mxu0 0
    %1635 = vmatpush1.bf16.msra.mxu0 0
    %1636 = vmatprep.subr.bf16.mxu0 0
    %1637 = vmatpush1.bf16.msra.mxu0 0
    %1638 = vmatprep.subr.bf16.mxu0 0
    %1639 = vmatpush1.bf16.msra.mxu0 0
    %1640 = vmatprep.subr.bf16.mxu0 0
    %1641 = vmatpush1.bf16.msra.mxu0 0
    %1642 = vmatprep.subr.bf16.mxu0 0
    %1643 = vmatpush1.bf16.msra.mxu0 0
    %1644 = vmatprep.subr.bf16.mxu0 0
    %1645 = vmatpush1.bf16.msra.mxu0 0
    %1646 = vmatprep.subr.bf16.mxu0 0
    %1647 = vmatpush1.bf16.msra.mxu0 0
    %1648 = vmatprep.subr.bf16.mxu0 0
    %1649 = vmatpush1.bf16.msra.mxu0 0
    %1650 = vmatprep.subr.bf16.mxu0 0
    %1651 = vmatpush1.bf16.msra.mxu0 0
    %1652 = vmatprep.subr.bf16.mxu0 0
    %1653 = vmatpush1.bf16.msra.mxu0 0
    %1654 = vmatprep.subr.bf16.mxu0 0
    %1655 = vmatpush1.bf16.msra.mxu0 0
    %1656 = vmatprep.subr.bf16.mxu0 0
    %1657 = vmatpush1.bf16.msra.mxu0 0
    %1658 = vmatprep.subr.bf16.mxu0 0
    %1659 = vmatpush1.bf16.msra.mxu0 0
    %1660 = vmatprep.subr.bf16.mxu0 0
    %1661 = vmatpush1.bf16.msra.mxu0 0
    %1662 = vmatprep.subr.bf16.mxu0 0
    %1663 = vmatpush1.bf16.msra.mxu0 0
    %1664 = vmatprep.mubr.bf16.mxu0 0
    %1665 = vmatmul.mubr.bf16.gmra.mrb[0].mxu0 %v1630
    %v1666 = vpop.f32.mrb[0].mxu0
    %v1667 = vadd.f32 0.0, %v1666
    %v1668 = vpop.f32.mrb[0].mxu0
    %v1669 = vpop.f32.mrb[0].mxu0
    %v1670 = vadd.f32 0.0, %v1669
    %v1671 = vpop.f32.mrb[0].mxu0
    %1672 = vdwg.mxu0
    %v1674 = vsel %vm1224, %v1407, 0
    %1676 = vmatprep.subr.bf16.mxu0 0
    %1677 = vmatpush1.bf16.msra.mxu0 %v845
    %1678 = vmatprep.subr.bf16.mxu0 0
    %1679 = vmatpush1.bf16.msra.mxu0 0
    %1680 = vmatprep.subr.bf16.mxu0 0
    %1681 = vmatpush1.bf16.msra.mxu0 0
    %1682 = vmatprep.subr.bf16.mxu0 0
    %1683 = vmatpush1.bf16.msra.mxu0 0
    %1684 = vmatprep.subr.bf16.mxu0 0
    %1685 = vmatpush1.bf16.msra.mxu0 0
    %1686 = vmatprep.subr.bf16.mxu0 0
    %1687 = vmatpush1.bf16.msra.mxu0 0
    %1688 = vmatprep.subr.bf16.mxu0 0
    %1689 = vmatpush1.bf16.msra.mxu0 0
    %1690 = vmatprep.subr.bf16.mxu0 0
    %1691 = vmatpush1.bf16.msra.mxu0 0
    %1692 = vmatprep.subr.bf16.mxu0 0
    %1693 = vmatpush1.bf16.msra.mxu0 0
    %1694 = vmatprep.subr.bf16.mxu0 0
    %1695 = vmatpush1.bf16.msra.mxu0 0
    %1696 = vmatprep.subr.bf16.mxu0 0
    %1697 = vmatpush1.bf16.msra.mxu0 0
    %1698 = vmatprep.subr.bf16.mxu0 0
    %1699 = vmatpush1.bf16.msra.mxu0 0
    %1700 = vmatprep.subr.bf16.mxu0 0
    %1701 = vmatpush1.bf16.msra.mxu0 0
    %1702 = vmatprep.subr.bf16.mxu0 0
    %1703 = vmatpush1.bf16.msra.mxu0 0
    %1704 = vmatprep.subr.bf16.mxu0 0
    %1705 = vmatpush1.bf16.msra.mxu0 0
    %1706 = vmatprep.subr.bf16.mxu0 0
    %1707 = vmatpush1.bf16.msra.mxu0 0
    %1708 = vmatprep.mubr.bf16.mxu0 0
    %1709 = vmatmul.mubr.bf16.gmra.mrb[0].mxu0 %v1674
    %v1710 = vpop.f32.mrb[0].mxu0
    %v1711 = vadd.f32 0.0, %v1710
    %v1712 = vpop.f32.mrb[0].mxu0
    %v1713 = vpop.f32.mrb[0].mxu0
    %v1714 = vadd.f32 0.0, %v1713
    %v1715 = vpop.f32.mrb[0].mxu0
    %1716 = vdwg.mxu0
    %v1718 = vsel %vm1224, %v1408, 0
    %1720 = vmatprep.subr.bf16.mxu0 0
    %1721 = vmatpush1.bf16.msra.mxu0 %v846
    %1722 = vmatprep.subr.bf16.mxu0 0
    %1723 = vmatpush1.bf16.msra.mxu0 0
    %1724 = vmatprep.subr.bf16.mxu0 0
    %1725 = vmatpush1.bf16.msra.mxu0 0
    %1726 = vmatprep.subr.bf16.mxu0 0
    %1727 = vmatpush1.bf16.msra.mxu0 0
    %1728 = vmatprep.subr.bf16.mxu0 0
    %1729 = vmatpush1.bf16.msra.mxu0 0
    %1730 = vmatprep.subr.bf16.mxu0 0
    %1731 = vmatpush1.bf16.msra.mxu0 0
    %1732 = vmatprep.subr.bf16.mxu0 0
    %1733 = vmatpush1.bf16.msra.mxu0 0
    %1734 = vmatprep.subr.bf16.mxu0 0
    %1735 = vmatpush1.bf16.msra.mxu0 0
    %1736 = vmatprep.subr.bf16.mxu0 0
    %1737 = vmatpush1.bf16.msra.mxu0 0
    %1738 = vmatprep.subr.bf16.mxu0 0
    %1739 = vmatpush1.bf16.msra.mxu0 0
    %1740 = vmatprep.subr.bf16.mxu0 0
    %1741 = vmatpush1.bf16.msra.mxu0 0
    %1742 = vmatprep.subr.bf16.mxu0 0
    %1743 = vmatpush1.bf16.msra.mxu0 0
    %1744 = vmatprep.subr.bf16.mxu0 0
    %1745 = vmatpush1.bf16.msra.mxu0 0
    %1746 = vmatprep.subr.bf16.mxu0 0
    %1747 = vmatpush1.bf16.msra.mxu0 0
    %1748 = vmatprep.subr.bf16.mxu0 0
    %1749 = vmatpush1.bf16.msra.mxu0 0
    %1750 = vmatprep.subr.bf16.mxu0 0
    %1751 = vmatpush1.bf16.msra.mxu0 0
    %1752 = vmatprep.mubr.bf16.mxu0 0
    %1753 = vmatmul.mubr.bf16.gmra.mrb[0].mxu0 %v1718
    %v1754 = vpop.f32.mrb[0].mxu0
    %v1755 = vadd.f32 0.0, %v1754
    %v1756 = vpop.f32.mrb[0].mxu0
    %v1757 = vpop.f32.mrb[0].mxu0
    %v1758 = vadd.f32 0.0, %v1757
    %v1759 = vpop.f32.mrb[0].mxu0
    %1760 = vdwg.mxu0
    %v1761 = vpack.c.bf16 %v1450, %v1447
    %v1762 = vpack.c.bf16 %v1494, %v1491
    %v1763 = vpack.c.bf16 %v1538, %v1535
    %v1764 = vpack.c.bf16 %v1582, %v1579
    %v1765 = vpack.c.bf16 %v1626, %v1623
    %v1766 = vpack.c.bf16 %v1670, %v1667
    %v1767 = vpack.c.bf16 %v1714, %v1711
    %v1768 = vpack.c.bf16 %v1758, %v1755
    %v1769 = vld [vmem:[%s4] sm:$0xf]
    %v1770 = vld [vmem:[%s4 + $0x4] sm:$0xf]
    %v1771 = vld [vmem:[%s4 + $0x8] sm:$0xf]
    %v1772 = vld [vmem:[%s4 + $0xc] sm:$0xf]
    %v1774 = vsel %vm847, %v1761, 0
    %v1777 = vsel %vm847, %v1762, 0
    %vm1779 = vcmask 1043456
    %v1781 = vsel %vm1779, %v1769, 0
    %1783 = vmatprep.subr.bf16.mxu0 0
    %1784 = vmatpush1.bf16.msra.mxu0 %v1781
    %1785 = vmatprep.subr.bf16.mxu0 0
    %1786 = vmatpush1.bf16.msra.mxu0 0
    %1787 = vmatprep.subr.bf16.mxu0 0
    %1788 = vmatpush1.bf16.msra.mxu0 0
    %1789 = vmatprep.subr.bf16.mxu0 0
    %1790 = vmatpush1.bf16.msra.mxu0 0
    %1791 = vmatprep.subr.bf16.mxu0 0
    %1792 = vmatpush1.bf16.msra.mxu0 0
    %1793 = vmatprep.subr.bf16.mxu0 0
    %1794 = vmatpush1.bf16.msra.mxu0 0
    %1795 = vmatprep.subr.bf16.mxu0 0
    %1796 = vmatpush1.bf16.msra.mxu0 0
    %1797 = vmatprep.subr.bf16.mxu0 0
    %1798 = vmatpush1.bf16.msra.mxu0 0
    %1799 = vmatprep.subr.bf16.mxu0 0
    %1800 = vmatpush1.bf16.msra.mxu0 0
    %1801 = vmatprep.subr.bf16.mxu0 0
    %1802 = vmatpush1.bf16.msra.mxu0 0
    %1803 = vmatprep.subr.bf16.mxu0 0
    %1804 = vmatpush1.bf16.msra.mxu0 0
    %1805 = vmatprep.subr.bf16.mxu0 0
    %1806 = vmatpush1.bf16.msra.mxu0 0
    %1807 = vmatprep.subr.bf16.mxu0 0
    %1808 = vmatpush1.bf16.msra.mxu0 0
    %1809 = vmatprep.subr.bf16.mxu0 0
    %1810 = vmatpush1.bf16.msra.mxu0 0
    %1811 = vmatprep.subr.bf16.mxu0 0
    %1812 = vmatpush1.bf16.msra.mxu0 0
    %1813 = vmatprep.subr.bf16.mxu0 0
    %1814 = vmatpush1.bf16.msra.mxu0 0
    %1815 = vmatprep.mubr.bf16.mxu0 0
    %1816 = vmatmul.mubr.bf16.gmra.mrb[0].mxu0 %v1774
    %v1817 = vpop.f32.mrb[0].mxu0
    %v1818 = vadd.f32 0.0, %v1817
    %v1819 = vpop.f32.mrb[0].mxu0
    %v1820 = vpop.f32.mrb[0].mxu0
    %v1821 = vadd.f32 0.0, %v1820
    %v1822 = vpop.f32.mrb[0].mxu0
    %1823 = vmatprep.mubr.bf16.mxu0 0
    %1824 = vmatmul.mubr.bf16.gmra.mrb[0].mxu0 %v1777
    %v1825 = vpop.f32.mrb[0].mxu0
    %v1826 = vadd.f32 0.0, %v1825
    %v1827 = vpop.f32.mrb[0].mxu0
    %v1828 = vpop.f32.mrb[0].mxu0
    %v1829 = vadd.f32 0.0, %v1828
    %v1830 = vpop.f32.mrb[0].mxu0
    %1831 = vdwg.mxu0
    %v1833 = vsel %vm847, %v1763, 0
    %v1836 = vsel %vm847, %v1764, 0
    %v1839 = vsel %vm1779, %v1770, 0
    %1841 = vmatprep.subr.bf16.mxu0 0
    %1842 = vmatpush1.bf16.msra.mxu0 %v1839
    %1843 = vmatprep.subr.bf16.mxu0 0
    %1844 = vmatpush1.bf16.msra.mxu0 0
    %1845 = vmatprep.subr.bf16.mxu0 0
    %1846 = vmatpush1.bf16.msra.mxu0 0
    %1847 = vmatprep.subr.bf16.mxu0 0
    %1848 = vmatpush1.bf16.msra.mxu0 0
    %1849 = vmatprep.subr.bf16.mxu0 0
    %1850 = vmatpush1.bf16.msra.mxu0 0
    %1851 = vmatprep.subr.bf16.mxu0 0
    %1852 = vmatpush1.bf16.msra.mxu0 0
    %1853 = vmatprep.subr.bf16.mxu0 0
    %1854 = vmatpush1.bf16.msra.mxu0 0
    %1855 = vmatprep.subr.bf16.mxu0 0
    %1856 = vmatpush1.bf16.msra.mxu0 0
    %1857 = vmatprep.subr.bf16.mxu0 0
    %1858 = vmatpush1.bf16.msra.mxu0 0
    %1859 = vmatprep.subr.bf16.mxu0 0
    %1860 = vmatpush1.bf16.msra.mxu0 0
    %1861 = vmatprep.subr.bf16.mxu0 0
    %1862 = vmatpush1.bf16.msra.mxu0 0
    %1863 = vmatprep.subr.bf16.mxu0 0
    %1864 = vmatpush1.bf16.msra.mxu0 0
    %1865 = vmatprep.subr.bf16.mxu0 0
    %1866 = vmatpush1.bf16.msra.mxu0 0
    %1867 = vmatprep.subr.bf16.mxu0 0
    %1868 = vmatpush1.bf16.msra.mxu0 0
    %1869 = vmatprep.subr.bf16.mxu0 0
    %1870 = vmatpush1.bf16.msra.mxu0 0
    %1871 = vmatprep.subr.bf16.mxu0 0
    %1872 = vmatpush1.bf16.msra.mxu0 0
    %1873 = vmatprep.mubr.bf16.mxu0 0
    %1874 = vmatmul.mubr.bf16.gmra.mrb[0].mxu0 %v1833
    %v1875 = vpop.f32.mrb[0].mxu0
    %v1876 = vadd.f32 0.0, %v1875
    %v1877 = vpop.f32.mrb[0].mxu0
    %v1878 = vpop.f32.mrb[0].mxu0
    %v1879 = vadd.f32 0.0, %v1878
    %v1880 = vpop.f32.mrb[0].mxu0
    %1881 = vmatprep.mubr.bf16.mxu0 0
    %1882 = vmatmul.mubr.bf16.gmra.mrb[0].mxu0 %v1836
    %v1883 = vpop.f32.mrb[0].mxu0
    %v1884 = vadd.f32 0.0, %v1883
    %v1885 = vpop.f32.mrb[0].mxu0
    %v1886 = vpop.f32.mrb[0].mxu0
    %v1887 = vadd.f32 0.0, %v1886
    %v1888 = vpop.f32.mrb[0].mxu0
    %1889 = vdwg.mxu0
    %v1891 = vsel %vm847, %v1765, 0
    %v1894 = vsel %vm847, %v1766, 0
    %v1897 = vsel %vm1779, %v1771, 0
    %1899 = vmatprep.subr.bf16.mxu0 0
    %1900 = vmatpush1.bf16.msra.mxu0 %v1897
    %1901 = vmatprep.subr.bf16.mxu0 0
    %1902 = vmatpush1.bf16.msra.mxu0 0
    %1903 = vmatprep.subr.bf16.mxu0 0
    %1904 = vmatpush1.bf16.msra.mxu0 0
    %1905 = vmatprep.subr.bf16.mxu0 0
    %1906 = vmatpush1.bf16.msra.mxu0 0
    %1907 = vmatprep.subr.bf16.mxu0 0
    %1908 = vmatpush1.bf16.msra.mxu0 0
    %1909 = vmatprep.subr.bf16.mxu0 0
    %1910 = vmatpush1.bf16.msra.mxu0 0
    %1911 = vmatprep.subr.bf16.mxu0 0
    %1912 = vmatpush1.bf16.msra.mxu0 0
    %1913 = vmatprep.subr.bf16.mxu0 0
    %1914 = vmatpush1.bf16.msra.mxu0 0
    %1915 = vmatprep.subr.bf16.mxu0 0
    %1916 = vmatpush1.bf16.msra.mxu0 0
    %1917 = vmatprep.subr.bf16.mxu0 0
    %1918 = vmatpush1.bf16.msra.mxu0 0
    %1919 = vmatprep.subr.bf16.mxu0 0
    %1920 = vmatpush1.bf16.msra.mxu0 0
    %1921 = vmatprep.subr.bf16.mxu0 0
    %1922 = vmatpush1.bf16.msra.mxu0 0
    %1923 = vmatprep.subr.bf16.mxu0 0
    %1924 = vmatpush1.bf16.msra.mxu0 0
    %1925 = vmatprep.subr.bf16.mxu0 0
    %1926 = vmatpush1.bf16.msra.mxu0 0
    %1927 = vmatprep.subr.bf16.mxu0 0
    %1928 = vmatpush1.bf16.msra.mxu0 0
    %1929 = vmatprep.subr.bf16.mxu0 0
    %1930 = vmatpush1.bf16.msra.mxu0 0
    %1931 = vmatprep.mubr.bf16.mxu0 0
    %1932 = vmatmul.mubr.bf16.gmra.mrb[0].mxu0 %v1891
    %v1933 = vpop.f32.mrb[0].mxu0
    %v1934 = vadd.f32 0.0, %v1933
    %v1935 = vpop.f32.mrb[0].mxu0
    %v1936 = vpop.f32.mrb[0].mxu0
    %v1937 = vadd.f32 0.0, %v1936
    %v1938 = vpop.f32.mrb[0].mxu0
    %1939 = vmatprep.mubr.bf16.mxu0 0
    %1940 = vmatmul.mubr.bf16.gmra.mrb[0].mxu0 %v1894
    %v1941 = vpop.f32.mrb[0].mxu0
    %v1942 = vadd.f32 0.0, %v1941
    %v1943 = vpop.f32.mrb[0].mxu0
    %v1944 = vpop.f32.mrb[0].mxu0
    %v1945 = vadd.f32 0.0, %v1944
    %v1946 = vpop.f32.mrb[0].mxu0
    %1947 = vdwg.mxu0
    %v1949 = vsel %vm847, %v1767, 0
    %v1952 = vsel %vm847, %v1768, 0
    %v1955 = vsel %vm1779, %v1772, 0
    %1957 = vmatprep.subr.bf16.mxu0 0
    %1958 = vmatpush1.bf16.msra.mxu0 %v1955
    %1959 = vmatprep.subr.bf16.mxu0 0
    %1960 = vmatpush1.bf16.msra.mxu0 0
    %1961 = vmatprep.subr.bf16.mxu0 0
    %1962 = vmatpush1.bf16.msra.mxu0 0
    %1963 = vmatprep.subr.bf16.mxu0 0
    %1964 = vmatpush1.bf16.msra.mxu0 0
    %1965 = vmatprep.subr.bf16.mxu0 0
    %1966 = vmatpush1.bf16.msra.mxu0 0
    %1967 = vmatprep.subr.bf16.mxu0 0
    %1968 = vmatpush1.bf16.msra.mxu0 0
    %1969 = vmatprep.subr.bf16.mxu0 0
    %1970 = vmatpush1.bf16.msra.mxu0 0
    %1971 = vmatprep.subr.bf16.mxu0 0
    %1972 = vmatpush1.bf16.msra.mxu0 0
    %1973 = vmatprep.subr.bf16.mxu0 0
    %1974 = vmatpush1.bf16.msra.mxu0 0
    %1975 = vmatprep.subr.bf16.mxu0 0
    %1976 = vmatpush1.bf16.msra.mxu0 0
    %1977 = vmatprep.subr.bf16.mxu0 0
    %1978 = vmatpush1.bf16.msra.mxu0 0
    %1979 = vmatprep.subr.bf16.mxu0 0
    %1980 = vmatpush1.bf16.msra.mxu0 0
    %1981 = vmatprep.subr.bf16.mxu0 0
    %1982 = vmatpush1.bf16.msra.mxu0 0
    %1983 = vmatprep.subr.bf16.mxu0 0
    %1984 = vmatpush1.bf16.msra.mxu0 0
    %1985 = vmatprep.subr.bf16.mxu0 0
    %1986 = vmatpush1.bf16.msra.mxu0 0
    %1987 = vmatprep.subr.bf16.mxu0 0
    %1988 = vmatpush1.bf16.msra.mxu0 0
    %1989 = vmatprep.mubr.bf16.mxu0 0
    %1990 = vmatmul.mubr.bf16.gmra.mrb[0].mxu0 %v1949
    %v1991 = vpop.f32.mrb[0].mxu0
    %v1992 = vadd.f32 0.0, %v1991
    %v1993 = vpop.f32.mrb[0].mxu0
    %v1994 = vpop.f32.mrb[0].mxu0
    %v1995 = vadd.f32 0.0, %v1994
    %v1996 = vpop.f32.mrb[0].mxu0
    %1997 = vmatprep.mubr.bf16.mxu0 0
    %1998 = vmatmul.mubr.bf16.gmra.mrb[0].mxu0 %v1952
    %v1999 = vpop.f32.mrb[0].mxu0
    %v2000 = vadd.f32 0.0, %v1999
    %v2001 = vpop.f32.mrb[0].mxu0
    %v2002 = vpop.f32.mrb[0].mxu0
    %v2003 = vadd.f32 0.0, %v2002
    %v2004 = vpop.f32.mrb[0].mxu0
    %2005 = vdwg.mxu0
    %v2006 = vsel %vm64, %v1818, 0.0
    %v2007 = vsel %vm64, %v1876, 0.0
    %v2008 = vadd.f32 %v2006, %v2007
    %v2009 = vsel %vm64, %v1934, 0.0
    %v2010 = vadd.f32 %v2008, %v2009
    %v2011 = vsel %vm64, %v1992, 0.0
    %v2012 = vadd.f32 %v2010, %v2011
    %v2013 = vsel %vm64, %v1821, 0.0
    %v2014 = vsel %vm64, %v1879, 0.0
    %v2015 = vadd.f32 %v2013, %v2014
    %v2016 = vsel %vm64, %v1937, 0.0
    %v2017 = vadd.f32 %v2015, %v2016
    %v2018 = vsel %vm64, %v1995, 0.0
    %v2019 = vadd.f32 %v2017, %v2018
    %v2020 = vsel %vm64, %v1826, 0.0
    %v2021 = vsel %vm64, %v1884, 0.0
    %v2022 = vadd.f32 %v2020, %v2021
    %v2023 = vsel %vm64, %v1942, 0.0
    %v2024 = vadd.f32 %v2022, %v2023
    %v2025 = vsel %vm64, %v2000, 0.0
    %v2026 = vadd.f32 %v2024, %v2025
    %v2027 = vsel %vm64, %v1829, 0.0
    %v2028 = vsel %vm64, %v1887, 0.0
    %v2029 = vadd.f32 %v2027, %v2028
    %v2030 = vsel %vm64, %v1945, 0.0
    %v2031 = vadd.f32 %v2029, %v2030
    %v2032 = vsel %vm64, %v2003, 0.0
    %v2033 = vadd.f32 %v2031, %v2032
    %2034 = vst.msk [vmem:[#allocation2] sm:$0xff] %vm64, %v2012
    %2035 = vst.msk [vmem:[#allocation2 + $0x8] sm:$0xff] %vm64, %v2019
    %2036 = vst.msk [vmem:[#allocation2 + $0x10] sm:$0xff] %vm64, %v2026
    %2037 = vst.msk [vmem:[#allocation2 + $0x18] sm:$0xff] %vm64, %v2033
    // Predicated region
    $region22: #{tpu_custom_call.1} parent=1 // pred_check
      _
    $region23: #{tpu_custom_call.1} parent=1 // pred_check_branch
      %2039 = sbr.rel (0) target = $region25
    $region24: #{tpu_custom_call.1} parent=1 // pred_region
      %s2041 = ssub.s32 512, 512
      %2042 = vsyncadd [#allocation3], %s2041
      %s2043 = sshll.u32 [#allocation2], 4
      %s2044 = int_to_ptr.vmem [resolvable:$true] %s2043
      %2049 = dma.vmem_to_hbm [thread:$0]  %s2044, 512, %s5, [#allocation3], 128, 128, 8
    $region25: #{tpu_custom_call.1} parent=1 // pred_fallthru
      _
    // Predicated region
    $region26: #{tpu_custom_call.1} parent=1 // pred_check
      _
    $region27: #{tpu_custom_call.1} parent=1 // pred_check_branch
      %2051 = sbr.rel (0) target = $region29
    $region28: #{tpu_custom_call.1} parent=1 // pred_region
      %2052 = dma.done [#allocation3], 512
    $region29: #{tpu_custom_call.1} parent=1 // pred_fallthru
      _
    %2053 = vsyncpa [#allocation3], 1

</llo_original>
